<compile_context>
chip_gen: v6e
topology: v6e:2x2x1
jax: 0.10.0
libtpu: 0.0.40
codegen_flags: <defaults>
</compile_context>

<pallas_src>
import functools

import jax
import jax.numpy as jnp
from jax.experimental import pallas as pl
from jax.experimental.pallas import tpu as pltpu

LATDIM = 32      # args.latdim
LEAKY = 0.1      # args.leaky
LANES = 128      # TPU vreg lane width
PACK = LANES // LATDIM   # 4 batch rows packed per 128-lane row


# ----------------------------------------------------------------------------
# One-time hyper-net kernel.
#   hyper_ref  : [N, D]
#   wflat_ref  : [D, EXT]     linear1^T | linear2^T | zero-pad (concatenated)
#   bflat_ref  : [1, EXT]     b1 | b2 | zero-pad
#   lmask_ref  : [128, EXT]   lmask[r, j]  = (j // D == r % D)
#   cmat_ref   : [EXT, 128]   cmat[j, c]   = (j % D  == c % D)
#   bvec_ref   : [EXT, 128]   bvec[j, c]   = (j == D*D + c % D)
#   bdmask_ref : [128, 128]   bdmask[r, c] = (r // D == c // D)
# Outputs:
#   w1bd_ref   : [128, 128]   kron(I_4, W1)   (block-diagonal packed weight)
#   b1bd_ref   : [1, 128]     b1 tiled 4x along lanes
# ----------------------------------------------------------------------------
def _hyper_kernel(hyper_ref, wflat_ref, bflat_ref, lmask_ref, cmat_ref,
                  bvec_ref, bdmask_ref, w1bd_ref, b1bd_ref):
    hmean = jnp.mean(hyper_ref[...], axis=0, keepdims=True)               # [1, D]
    # fused linear1 + linear2:  [1, D] @ [D, EXT] + [1, EXT]
    v = (jnp.dot(hmean, wflat_ref[...], preferred_element_type=jnp.float32)
         + bflat_ref[...])                                                # [1, EXT]
    # MXU-based unflatten straight into block-diagonal form:
    #   (lmask * v) @ cmat  gives  T[r, c] = v[(r % D)*D + (c % D)]
    x = lmask_ref[...] * v                                                # [128, EXT]
    w1bd_ref[...] = bdmask_ref[...] * jnp.dot(
        x, cmat_ref[...], preferred_element_type=jnp.float32)             # [128, 128]
    # lane-tiled bias:  b1bd[c] = v[D*D + c % D]
    b1bd_ref[...] = jnp.dot(v, bvec_ref[...],
                            preferred_element_type=jnp.float32)           # [1, 128]


# ----------------------------------------------------------------------------
# Hot-path mapping kernel: LeakyReLU(key_packed @ W1_bd + b1_bd)
#   w_ref   : [128, 128]  (f32; cast to key dtype for the MXU operand)
#   b_ref   : [1, 128]    (f32)
#   key_ref : [tile, 128] (lane-packed batch)
#   out_ref : [tile, 128]
# ----------------------------------------------------------------------------
def _mapping_kernel(w_ref, b_ref, key_ref, out_ref, *, leaky):
    k = key_ref[...]
    y = jnp.dot(k, w_ref[...].astype(k.dtype),
                preferred_element_type=jnp.float32) + b_ref[...]
    out_ref[...] = jnp.maximum(y, leaky * y).astype(out_ref.dtype)


# ----------------------------------------------------------------------------
# Parameter init (raw PyTorch layout) and one-time packing (out of hot path).
# ----------------------------------------------------------------------------
def init_params(key, latdim):
    """Deterministic PyTorch-style (uniform +-1/sqrt(fan_in)) init."""
    k1, k2, k3, k4 = jax.random.split(key, 4)
    bound = 1.0 / jnp.sqrt(latdim)
    return {
        # linear1: in=latdim, out=latdim*latdim  (weight shape [out, in])
        "w1": jax.random.uniform(k1, (latdim * latdim, latdim),
                                 minval=-bound, maxval=bound, dtype=jnp.float32),
        "b1": jax.random.uniform(k2, (latdim * latdim,),
                                 minval=-bound, maxval=bound, dtype=jnp.float32),
        # linear2: in=latdim, out=latdim
        "w2": jax.random.uniform(k3, (latdim, latdim),
                                 minval=-bound, maxval=bound, dtype=jnp.float32),
        "b2": jax.random.uniform(k4, (latdim,),
                                 minval=-bound, maxval=bound, dtype=jnp.float32),
    }


def pack_params(params, latdim):
    """One-time prep: transpose + concatenate weights, build selection consts."""
    D = latdim
    assert LANES % D == 0, "latdim must divide 128 for lane packing"
    EXT = ((D * D + D + LANES - 1) // LANES) * LANES      # pad lanes to 128-mult
    w1, b1 = params["w1"], params["b1"]                   # [D*D, D], [D*D]
    w2, b2 = params["w2"], params["b2"]                   # [D, D],   [D]
    wflat = jnp.zeros((D, EXT), jnp.float32)
    wflat = wflat.at[:, :D * D].set(w1.T).at[:, D * D:D * D + D].set(w2.T)
    bflat = jnp.zeros((1, EXT), jnp.float32)
    bflat = bflat.at[0, :D * D].set(b1).at[0, D * D:D * D + D].set(b2)
    j = jnp.arange(EXT)
    r = jnp.arange(LANES)
    lmask_bd = (j[None, :] // D == (r % D)[:, None]).astype(jnp.float32)    # [128,EXT]
    cmat_wide = ((j % D)[:, None] == (r % D)[None, :]).astype(jnp.float32)  # [EXT,128]
    bvec = (j[:, None] == (D * D + (r % D))[None, :]).astype(jnp.float32)   # [EXT,128]
    bdmask = ((r // D)[:, None] == (r // D)[None, :]).astype(jnp.float32)   # [128,128]
    return {"wflat": wflat, "bflat": bflat, "lmask_bd": lmask_bd,
            "cmat_wide": cmat_wide, "bvec": bvec, "bdmask": bdmask,
            "latdim": D, "ext": EXT}


# ----------------------------------------------------------------------------
# Forward wrapper: returns the `mapping` closure (same semantics as Meta).
# ----------------------------------------------------------------------------
def meta_forward(hyper, packed, *, leaky=LEAKY,
                 max_packed_tile=2048,      # 2048 packed rows = 8192 batch rows
                 min_split_rows=512):       # split grid >=2 once Mp exceeds this
    D = packed["latdim"]
    EXT = packed["ext"]
    N = hyper.shape[0]

    # --- one-time hyper-net: block-diag packed W1 and lane-tiled b1 ----------
    w1bd, b1bd = pl.pallas_call(
        _hyper_kernel,
        out_shape=(jax.ShapeDtypeStruct((LANES, LANES), jnp.float32),
                   jax.ShapeDtypeStruct((1, LANES), jnp.float32)),
        grid=(1,),
        in_specs=[
            pl.BlockSpec((N, D), lambda i: (0, 0)),          # hyper
            pl.BlockSpec((D, EXT), lambda i: (0, 0)),        # wflat
            pl.BlockSpec((1, EXT), lambda i: (0, 0)),        # bflat
            pl.BlockSpec((LANES, EXT), lambda i: (0, 0)),    # lmask_bd
            pl.BlockSpec((EXT, LANES), lambda i: (0, 0)),    # cmat_wide
            pl.BlockSpec((EXT, LANES), lambda i: (0, 0)),    # bvec
            pl.BlockSpec((LANES, LANES), lambda i: (0, 0)),  # bdmask
        ],
        out_specs=(pl.BlockSpec((LANES, LANES), lambda i: (0, 0)),
                   pl.BlockSpec((1, LANES), lambda i: (0, 0))),
    )(hyper, packed["wflat"], packed["bflat"], packed["lmask_bd"],
      packed["cmat_wide"], packed["bvec"], packed["bdmask"])

    kernel = functools.partial(_mapping_kernel, leaky=leaky)

    def mapping(key):
        M = key.shape[0]
        Mp = -(-M // PACK)                 # packed rows
        M_pad = Mp * PACK
        kp = key if M_pad == M else jnp.pad(key, ((0, M_pad - M), (0, 0)))
        kp = kp.reshape(Mp, LANES)         # lane-pack: free row-major reshape

        # Tile selection: one full block for small M; for large M keep >= 2
        # blocks so v7x megacore ("parallel") gets both TensorCores busy,
        # capped at max_packed_tile (~1 MiB/tile f32, ~4 MiB double-buffered).
        if Mp <= min_split_rows:
            tile = Mp
        else:
            half = ((-(-Mp // 2) + 7) // 8) * 8
            tile = min(max_packed_tile, half)
        grid = (pl.cdiv(Mp, tile),)

        out = pl.pallas_call(
            kernel,
            out_shape=jax.ShapeDtypeStruct((Mp, LANES), key.dtype),
            grid=grid,
            in_specs=[
                pl.BlockSpec((LANES, LANES), lambda i: (0, 0)),  # W1 block-diag
                pl.BlockSpec((1, LANES), lambda i: (0, 0)),      # b1 lane-tiled
                pl.BlockSpec((tile, LANES), lambda i: (i, 0)),   # key (packed)
            ],
            out_specs=pl.BlockSpec((tile, LANES), lambda i: (i, 0)),
            compiler_params=pltpu.CompilerParams(
                dimension_semantics=("parallel",)),
        )(w1bd, b1bd, kp)
        return out.reshape(M_pad, D)[:M]   # unpack lanes, drop padding rows

    return mapping


if __name__ == "__main__":
    D = LATDIM
    root = jax.random.PRNGKey(0)
    kprm, kh, kk, kk2 = jax.random.split(root, 4)

    params = init_params(kprm, D)
    packed = pack_params(params, D)                 # one-time, outside hot path

    hyper = jax.random.normal(kh, (8, D), dtype=jnp.float32)     # [N, latdim]
    mapping = meta_forward(hyper, packed)

    # pure-JAX reference
    hmean = jnp.mean(hyper, axis=0, keepdims=True)
    W1_ref = (hmean @ params["w1"].T + params["b1"]).reshape(D, D)
    b1_ref = hmean @ params["w2"].T + params["b2"]

    def ref_map(key):
        y = key.astype(jnp.float32) @ W1_ref + b1_ref
        return jnp.where(y >= 0.0, y, LEAKY * y)

    # small input: single grid step, full-array (non-multiple-of-8) block
    key_small = jax.random.normal(kk, (16, D), dtype=jnp.float32)
    out_small = jax.block_until_ready(mapping(key_small))
    assert out_small.shape == (16, D) and out_small.dtype == jnp.float32
    assert jnp.allclose(out_small, ref_map(key_small), atol=1e-5, rtol=1e-4), \
        "mismatch vs reference (small)"

    # larger input, not a multiple of 4: exercises row padding, lane packing,
    # the >=2-block grid split and the partial last block
    key_big = jax.random.normal(kk2, (2601, D), dtype=jnp.float32)
    out_big = jax.block_until_ready(mapping(key_big))
    assert out_big.shape == (2601, D)
    assert jnp.allclose(out_big, ref_map(key_big), atol=1e-5, rtol=1e-4), \
        "mismatch vs reference (big)"

    # bf16 streaming path (bf16 operands, f32 accumulate + f32 epilogue)
    key_bf = key_big.astype(jnp.bfloat16)
    out_bf = jax.block_until_ready(mapping(key_bf))
    assert out_bf.shape == (2601, D) and out_bf.dtype == jnp.bfloat16
    assert jnp.allclose(out_bf.astype(jnp.float32), ref_map(key_big),
                        atol=5e-2, rtol=5e-2), "mismatch vs reference (bf16)"

    print("KERNEL_OK")
</pallas_src>

<mosaic_0001>
module attributes {stable_mosaic.version = 11 : i64} {
  func.func @_hyper_kernel(%arg0: i32, %arg1: memref<8x32xf32, #tpu.memory_space<vmem>>, %arg2: memref<32x1152xf32, #tpu.memory_space<vmem>>, %arg3: memref<1x1152xf32, #tpu.memory_space<vmem>>, %arg4: memref<128x1152xf32, #tpu.memory_space<vmem>>, %arg5: memref<1152x128xf32, #tpu.memory_space<vmem>>, %arg6: memref<1152x128xf32, #tpu.memory_space<vmem>>, %arg7: memref<128x128xf32, #tpu.memory_space<vmem>>, %arg8: memref<128x128xf32, #tpu.memory_space<vmem>>, %arg9: memref<1x128xf32, #tpu.memory_space<vmem>>) attributes {dimension_semantics = [#tpu.dimension_semantics<arbitrary>], iteration_bounds = array<i64: 1>, scalar_prefetch = 0 : i64, scratch_operands = 0 : i64, tpu.core_type = #tpu.core_type<tc>, window_params = [{pipeline_mode = #tpu.pipeline_mode<synchronous>, transform_indices = @transform_0, window_bounds = array<i64: 8, 32>}, {pipeline_mode = #tpu.pipeline_mode<synchronous>, transform_indices = @transform_1, window_bounds = array<i64: 32, 1152>}, {pipeline_mode = #tpu.pipeline_mode<synchronous>, transform_indices = @transform_2, window_bounds = array<i64: 1, 1152>}, {pipeline_mode = #tpu.pipeline_mode<synchronous>, transform_indices = @transform_3, window_bounds = array<i64: 128, 1152>}, {pipeline_mode = #tpu.pipeline_mode<synchronous>, transform_indices = @transform_4, window_bounds = array<i64: 1152, 128>}, {pipeline_mode = #tpu.pipeline_mode<synchronous>, transform_indices = @transform_5, window_bounds = array<i64: 1152, 128>}, {pipeline_mode = #tpu.pipeline_mode<synchronous>, transform_indices = @transform_6, window_bounds = array<i64: 128, 128>}, {pipeline_mode = #tpu.pipeline_mode<synchronous>, transform_indices = @transform_7, window_bounds = array<i64: 128, 128>}, {pipeline_mode = #tpu.pipeline_mode<synchronous>, transform_indices = @transform_8, window_bounds = array<i64: 1, 128>}]} {
    %c0 = arith.constant 0 : index
    %c0_0 = arith.constant 0 : index
    %0 = vector.load %arg1[%c0, %c0_0] : memref<8x32xf32, #tpu.memory_space<vmem>>, vector<8x32xf32>
    %cst = arith.constant dense<0.000000e+00> : vector<32xf32>
    %1 = vector.multi_reduction <add>, %0, %cst [0] : vector<8x32xf32> to vector<32xf32>
    %2 = vector.shape_cast %1 : vector<32xf32> to vector<1x32xf32>
    %cst_1 = arith.constant 8.000000e+00 : f32
    %3 = vector.broadcast %cst_1 : f32 to vector<1x32xf32>
    %4 = arith.divf %2, %3 : vector<1x32xf32>
    %c0_2 = arith.constant 0 : index
    %c0_3 = arith.constant 0 : index
    %5 = vector.load %arg2[%c0_2, %c0_3] : memref<32x1152xf32, #tpu.memory_space<vmem>>, vector<32x1152xf32>
    %cst_4 = arith.constant dense<0.000000e+00> : vector<1x1152xf32>
    %6 = tpu.matmul %4, %5, %cst_4 {dimension_numbers = #tpu.dot_dimension_numbers<[1], [0], [0], [1], [0, 0, 1, 1], [], []>} : vector<1x32xf32>, vector<32x1152xf32>, vector<1x1152xf32> -> vector<1x1152xf32>
    %c0_5 = arith.constant 0 : index
    %c0_6 = arith.constant 0 : index
    %7 = vector.load %arg3[%c0_5, %c0_6] : memref<1x1152xf32, #tpu.memory_space<vmem>>, vector<1x1152xf32>
    %8 = arith.addf %6, %7 : vector<1x1152xf32>
    %c0_7 = arith.constant 0 : index
    %c0_8 = arith.constant 0 : index
    %9 = vector.load %arg4[%c0_7, %c0_8] : memref<128x1152xf32, #tpu.memory_space<vmem>>, vector<128x1152xf32>
    %10 = vector.broadcast %8 : vector<1x1152xf32> to vector<128x1152xf32>
    %11 = arith.mulf %9, %10 : vector<128x1152xf32>
    %c0_9 = arith.constant 0 : index
    %c0_10 = arith.constant 0 : index
    %12 = vector.load %arg7[%c0_9, %c0_10] : memref<128x128xf32, #tpu.memory_space<vmem>>, vector<128x128xf32>
    %c0_11 = arith.constant 0 : index
    %c0_12 = arith.constant 0 : index
    %13 = vector.load %arg5[%c0_11, %c0_12] : memref<1152x128xf32, #tpu.memory_space<vmem>>, vector<1152x128xf32>
    %cst_13 = arith.constant dense<0.000000e+00> : vector<128x128xf32>
    %14 = tpu.matmul %11, %13, %cst_13 {dimension_numbers = #tpu.dot_dimension_numbers<[1], [0], [0], [1], [0, 0, 1, 1], [], []>} : vector<128x1152xf32>, vector<1152x128xf32>, vector<128x128xf32> -> vector<128x128xf32>
    %15 = arith.mulf %12, %14 : vector<128x128xf32>
    %c0_14 = arith.constant 0 : index
    %c0_15 = arith.constant 0 : index
    %16 = vector.load %arg8[%c0_14, %c0_15] : memref<128x128xf32, #tpu.memory_space<vmem>>, vector<128x128xf32>
    tpu.vector_store %arg8[%c0_14, %c0_15], %15 {strides = array<i32>} : memref<128x128xf32, #tpu.memory_space<vmem>>, vector<128x128xf32>,
    %c0_16 = arith.constant 0 : index
    %c0_17 = arith.constant 0 : index
    %17 = vector.load %arg6[%c0_16, %c0_17] : memref<1152x128xf32, #tpu.memory_space<vmem>>, vector<1152x128xf32>
    %cst_18 = arith.constant dense<0.000000e+00> : vector<1x128xf32>
    %18 = tpu.matmul %8, %17, %cst_18 {dimension_numbers = #tpu.dot_dimension_numbers<[1], [0], [0], [1], [0, 0, 1, 1], [], []>} : vector<1x1152xf32>, vector<1152x128xf32>, vector<1x128xf32> -> vector<1x128xf32>
    %c0_19 = arith.constant 0 : index
    %c0_20 = arith.constant 0 : index
    %19 = vector.load %arg9[%c0_19, %c0_20] : memref<1x128xf32, #tpu.memory_space<vmem>>, vector<1x128xf32>
    tpu.vector_store %arg9[%c0_19, %c0_20], %18 {strides = array<i32>} : memref<1x128xf32, #tpu.memory_space<vmem>>, vector<1x128xf32>,
    return
  }
  func.func @transform_0(%arg0: i32) -> (i32, i32) {
    %c0_i32 = arith.constant 0 : i32
    %c0_i32_0 = arith.constant 0 : i32
    %c0_i32_1 = arith.constant 0 : i32
    return %c0_i32, %c0_i32_0 : i32, i32
  }
  func.func @transform_1(%arg0: i32) -> (i32, i32) {
    %c0_i32 = arith.constant 0 : i32
    %c0_i32_0 = arith.constant 0 : i32
    %c0_i32_1 = arith.constant 0 : i32
    return %c0_i32, %c0_i32_0 : i32, i32
  }
  func.func @transform_2(%arg0: i32) -> (i32, i32) {
    %c0_i32 = arith.constant 0 : i32
    %c0_i32_0 = arith.constant 0 : i32
    %c0_i32_1 = arith.constant 0 : i32
    return %c0_i32, %c0_i32_0 : i32, i32
  }
  func.func @transform_3(%arg0: i32) -> (i32, i32) {
    %c0_i32 = arith.constant 0 : i32
    %c0_i32_0 = arith.constant 0 : i32
    %c0_i32_1 = arith.constant 0 : i32
    return %c0_i32, %c0_i32_0 : i32, i32
  }
  func.func @transform_4(%arg0: i32) -> (i32, i32) {
    %c0_i32 = arith.constant 0 : i32
    %c0_i32_0 = arith.constant 0 : i32
    %c0_i32_1 = arith.constant 0 : i32
    return %c0_i32, %c0_i32_0 : i32, i32
  }
  func.func @transform_5(%arg0: i32) -> (i32, i32) {
    %c0_i32 = arith.constant 0 : i32
    %c0_i32_0 = arith.constant 0 : i32
    %c0_i32_1 = arith.constant 0 : i32
    return %c0_i32, %c0_i32_0 : i32, i32
  }
  func.func @transform_6(%arg0: i32) -> (i32, i32) {
    %c0_i32 = arith.constant 0 : i32
    %c0_i32_0 = arith.constant 0 : i32
    %c0_i32_1 = arith.constant 0 : i32
    return %c0_i32, %c0_i32_0 : i32, i32
  }
  func.func @transform_7(%arg0: i32) -> (i32, i32) {
    %c0_i32 = arith.constant 0 : i32
    %c0_i32_0 = arith.constant 0 : i32
    %c0_i32_1 = arith.constant 0 : i32
    return %c0_i32, %c0_i32_0 : i32, i32
  }
  func.func @transform_8(%arg0: i32) -> (i32, i32) {
    %c0_i32 = arith.constant 0 : i32
    %c0_i32_0 = arith.constant 0 : i32
    %c0_i32_1 = arith.constant 0 : i32
    return %c0_i32, %c0_i32_0 : i32, i32
  }
}

</mosaic_0001>

<llo_original>
// kernel: tpu_custom_call.1
$region0: #{tpu_custom_call.1}
  #allocation0 [shape = 'u32[]', space=smem, size = 0x4, offset = 0x4, fixed_abs, tag = 'smem constant byte address 0x4 - core index']
  #allocation1 [shape = 'u32[144,128]{1,0:T(1,128)}', space=vmem, size = 0x12000, scoped, tag = 'internal scratch']
  %s0 = inlined_call_operand.hbm [shape: f32[8,32], index: 0, kind: input, shape index: {}]
  %s1 = inlined_call_operand.hbm [shape: f32[32,1152], index: 1, kind: input, shape index: {}]
  %s2 = inlined_call_operand.hbm [shape: f32[1,1152], index: 2, kind: input, shape index: {}]
  %s3 = inlined_call_operand.hbm [shape: f32[128,1152], index: 3, kind: input, shape index: {}]
  %s4 = inlined_call_operand.hbm [shape: f32[1152,128], index: 4, kind: input, shape index: {}]
  %s5 = inlined_call_operand.hbm [shape: f32[1152,128], index: 5, kind: input, shape index: {}]
  %s6 = inlined_call_operand.hbm [shape: f32[128,128], index: 6, kind: input, shape index: {}]
  %s7 = inlined_call_operand.hbm [shape: f32[128,128], index: 7, kind: output, shape index: {0}]
  %s8 = inlined_call_operand.hbm [shape: f32[1,128], index: 8, kind: output, shape index: {1}]
  %9 = xla_tuple %s7, %s8
  %s10 = sld [smem:[#allocation0]]
  $region74: #{tpu_custom_call.1} parent=0
    _
  %s12 = ssub.s32 1, %s10
  %s13 = scalar_select 0, %s12, %s10
  $region1: #{tpu_custom_call.1} parent=0
    #allocation2 [shape = 'u8[4096]{0}', space=vmem, size = 0x1000, scoped, tag = 'input window, operand 0, single buffered']
    #allocation3 [shape = 's32[1]{0}', space=sflag, size = 0x4, scoped, tag = 'scoped memory for tpu_custom_call.1']
    #allocation4 [shape = 's32[1]{0}', space=sflag, size = 0x4, scoped, tag = 'scoped memory for tpu_custom_call.1']
    #allocation5 [shape = 'u8[147456]{0}', space=vmem, size = 0x24000, scoped, tag = 'input window, operand 1, single buffered']
    #allocation6 [shape = 's32[1]{0}', space=sflag, size = 0x4, scoped, tag = 'scoped memory for tpu_custom_call.1']
    #allocation7 [shape = 'u8[4608]{0}', space=vmem, size = 0x1400, scoped, tag = 'input window, operand 2, single buffered']
    #allocation8 [shape = 'u8[589824]{0}', space=vmem, size = 0x90000, scoped, tag = 'input window, operand 3, single buffered']
    #allocation9 [shape = 's32[1]{0}', space=sflag, size = 0x4, scoped, tag = 'scoped memory for tpu_custom_call.1']
    #allocation10 [shape = 'u8[589824]{0}', space=vmem, size = 0x90000, scoped, tag = 'input window, operand 4, single buffered']
    #allocation11 [shape = 'u8[589824]{0}', space=vmem, size = 0x90000, scoped, tag = 'input window, operand 5, single buffered']
    #allocation12 [shape = 's32[1]{0}', space=sflag, size = 0x4, scoped, tag = 'scoped memory for tpu_custom_call.1']
    #allocation13 [shape = 'u8[65536]{0}', space=vmem, size = 0x10000, scoped, tag = 'input window, operand 6, single buffered']
    #allocation14 [shape = 'u8[65536]{0}', space=vmem, size = 0x10000, scoped, tag = 'output window, operand 0, single buffered']
    #allocation15 [shape = 'u8[512]{0}', space=vmem, size = 0x400, scoped, tag = 'output window, operand 1, single buffered']
    #allocation16 [shape = 's32[1]{0}', space=sflag, size = 0x4, scoped, tag = 'scoped memory for tpu_custom_call.1']
    %14 = vsyncpa [#allocation3], 0
    %15 = vsyncpa [#allocation6], 0
    %16 = vsyncpa [#allocation9], 0
    %17 = vsyncpa [#allocation12], 0
    %18 = vsyncpa [#allocation4], 0
    %19 = vsyncpa [#allocation16], 0
    // Predicated region
    $region2: #{tpu_custom_call.1} parent=1 // pred_check
      _
    $region3: #{tpu_custom_call.1} parent=1 // pred_check_branch
      %21 = sbr.rel (0) target = $region5
    $region4: #{tpu_custom_call.1} parent=1 // pred_region
      %s23 = ssub.s32 128, 128
      %24 = vsyncadd [#allocation3], %s23
      %s26 = sshll.u32 [#allocation2], 4
      %s27 = int_to_ptr.vmem [resolvable:$true] %s26
      %29 = dma.hbm_to_vmem [thread:$0]  %s0, 128, %s27, [#allocation3]
    $region5: #{tpu_custom_call.1} parent=1 // pred_fallthru
      _
    // Predicated region
    $region6: #{tpu_custom_call.1} parent=1 // pred_check
      _
    $region7: #{tpu_custom_call.1} parent=1 // pred_check_branch
      %31 = sbr.rel (0) target = $region9
    $region8: #{tpu_custom_call.1} parent=1 // pred_region
      %s33 = ssub.s32 4608, 4608
      %34 = vsyncadd [#allocation6], %s33
      %s35 = sshll.u32 [#allocation5], 4
      %s36 = int_to_ptr.vmem [resolvable:$true] %s35
      %41 = dma.hbm_to_vmem [thread:$0]  %s1, 4608, %s36, [#allocation6], 1152, 1152, 72
    $region9: #{tpu_custom_call.1} parent=1 // pred_fallthru
      _
    // Predicated region
    $region10: #{tpu_custom_call.1} parent=1 // pred_check
      _
    $region11: #{tpu_custom_call.1} parent=1 // pred_check_branch
      %43 = sbr.rel (0) target = $region13
    $region12: #{tpu_custom_call.1} parent=1 // pred_region
      %s45 = ssub.s32 144, 144
      %46 = vsyncadd [#allocation6], %s45
      %s48 = sshll.u32 [#allocation7], 4
      %s49 = int_to_ptr.vmem [resolvable:$true] %s48
      %51 = dma.hbm_to_vmem [thread:$0]  %s2, 144, %s49, [#allocation6]
    $region13: #{tpu_custom_call.1} parent=1 // pred_fallthru
      _
    // Predicated region
    $region14: #{tpu_custom_call.1} parent=1 // pred_check
      _
    $region15: #{tpu_custom_call.1} parent=1 // pred_check_branch
      %53 = sbr.rel (0) target = $region17
    $region16: #{tpu_custom_call.1} parent=1 // pred_region
      %s55 = ssub.s32 18432, 18432
      %56 = vsyncadd [#allocation9], %s55
      %s57 = sshll.u32 [#allocation8], 4
      %s58 = int_to_ptr.vmem [resolvable:$true] %s57
      %63 = dma.hbm_to_vmem [thread:$0]  %s3, 18432, %s58, [#allocation9], 1152, 1152, 72
    $region17: #{tpu_custom_call.1} parent=1 // pred_fallthru
      _
    // Predicated region
    $region18: #{tpu_custom_call.1} parent=1 // pred_check
      _
    $region19: #{tpu_custom_call.1} parent=1 // pred_check_branch
      %65 = sbr.rel (0) target = $region21
    $region20: #{tpu_custom_call.1} parent=1 // pred_region
      %s67 = ssub.s32 18432, 18432
      %68 = vsyncadd [#allocation9], %s67
      %s69 = sshll.u32 [#allocation10], 4
      %s70 = int_to_ptr.vmem [resolvable:$true] %s69
      %75 = dma.hbm_to_vmem [thread:$0]  %s4, 18432, %s70, [#allocation9], 128, 128, 8
    $region21: #{tpu_custom_call.1} parent=1 // pred_fallthru
      _
    // Predicated region
    $region22: #{tpu_custom_call.1} parent=1 // pred_check
      _
    $region23: #{tpu_custom_call.1} parent=1 // pred_check_branch
      %77 = sbr.rel (0) target = $region25
    $region24: #{tpu_custom_call.1} parent=1 // pred_region
      %s79 = ssub.s32 18432, 18432
      %80 = vsyncadd [#allocation12], %s79
      %s81 = sshll.u32 [#allocation11], 4
      %s82 = int_to_ptr.vmem [resolvable:$true] %s81
      %87 = dma.hbm_to_vmem [thread:$0]  %s5, 18432, %s82, [#allocation12], 128, 128, 8
    $region25: #{tpu_custom_call.1} parent=1 // pred_fallthru
      _
    // Predicated region
    $region26: #{tpu_custom_call.1} parent=1 // pred_check
      _
    $region27: #{tpu_custom_call.1} parent=1 // pred_check_branch
      %89 = sbr.rel (0) target = $region29
    $region28: #{tpu_custom_call.1} parent=1 // pred_region
      %s91 = ssub.s32 2048, 2048
      %92 = vsyncadd [#allocation12], %s91
      %s93 = sshll.u32 [#allocation13], 4
      %s94 = int_to_ptr.vmem [resolvable:$true] %s93
      %99 = dma.hbm_to_vmem [thread:$0]  %s6, 2048, %s94, [#allocation12], 128, 128, 8
    $region29: #{tpu_custom_call.1} parent=1 // pred_fallthru
      _
    // Predicated region
    $region30: #{tpu_custom_call.1} parent=1 // pred_check
      _
    $region31: #{tpu_custom_call.1} parent=1 // pred_check_branch
      %101 = sbr.rel (0) target = $region33
    $region32: #{tpu_custom_call.1} parent=1 // pred_region
      %102 = dma.done [#allocation3], 128
    $region33: #{tpu_custom_call.1} parent=1 // pred_fallthru
      _
    // Predicated region
    $region34: #{tpu_custom_call.1} parent=1 // pred_check
      _
    $region35: #{tpu_custom_call.1} parent=1 // pred_check_branch
      %104 = sbr.rel (0) target = $region37
    $region36: #{tpu_custom_call.1} parent=1 // pred_region
      %105 = dma.done [#allocation6], 4608
    $region37: #{tpu_custom_call.1} parent=1 // pred_fallthru
      _
    // Predicated region
    $region38: #{tpu_custom_call.1} parent=1 // pred_check
      _
    $region39: #{tpu_custom_call.1} parent=1 // pred_check_branch
      %107 = sbr.rel (0) target = $region41
    $region40: #{tpu_custom_call.1} parent=1 // pred_region
      %108 = dma.done [#allocation6], 144
    $region41: #{tpu_custom_call.1} parent=1 // pred_fallthru
      _
    // Predicated region
    $region42: #{tpu_custom_call.1} parent=1 // pred_check
      _
    $region43: #{tpu_custom_call.1} parent=1 // pred_check_branch
      %110 = sbr.rel (0) target = $region45
    $region44: #{tpu_custom_call.1} parent=1 // pred_region
      %111 = dma.done [#allocation9], 18432
    $region45: #{tpu_custom_call.1} parent=1 // pred_fallthru
      _
    // Predicated region
    $region46: #{tpu_custom_call.1} parent=1 // pred_check
      _
    $region47: #{tpu_custom_call.1} parent=1 // pred_check_branch
      %113 = sbr.rel (0) target = $region49
    $region48: #{tpu_custom_call.1} parent=1 // pred_region
      %114 = dma.done [#allocation9], 18432
    $region49: #{tpu_custom_call.1} parent=1 // pred_fallthru
      _
    // Predicated region
    $region50: #{tpu_custom_call.1} parent=1 // pred_check
      _
    $region51: #{tpu_custom_call.1} parent=1 // pred_check_branch
      %116 = sbr.rel (0) target = $region53
    $region52: #{tpu_custom_call.1} parent=1 // pred_region
      %117 = dma.done [#allocation12], 18432
    $region53: #{tpu_custom_call.1} parent=1 // pred_fallthru
      _
    // Predicated region
    $region54: #{tpu_custom_call.1} parent=1 // pred_check
      _
    $region55: #{tpu_custom_call.1} parent=1 // pred_check_branch
      %119 = sbr.rel (0) target = $region57
    $region56: #{tpu_custom_call.1} parent=1 // pred_region
      %120 = dma.done [#allocation12], 2048
    $region57: #{tpu_custom_call.1} parent=1 // pred_fallthru
      _
    %v121 = vld [vmem:[#allocation2] sm:$0xff]
    %vm122 = vcmask 261120
    %v123 = vsel %vm122, %v121, 0.0
    %v124 = vrot.slane %v123, 4
    %v125 = vadd.f32 %v123, %v124
    %v126 = vrot.slane %v125, 2
    %v127 = vadd.f32 %v125, %v126
    %v128 = vrot.slane %v127, 1
    %v129 = vadd.f32 %v127, %v128
    %v130 = vrcp.pop 8.0
    %v131 = vmul.f32 %v129, %v130
    %v132 = vld [vmem:[#allocation5] sm:$0xff]
    %v133 = vld [vmem:[#allocation5 + $0x8] sm:$0xff]
    %v134 = vld [vmem:[#allocation5 + $0x10] sm:$0xff]
    %v135 = vld [vmem:[#allocation5 + $0x18] sm:$0xff]
    %v136 = vld [vmem:[#allocation5 + $0x20] sm:$0xff]
    %v137 = vld [vmem:[#allocation5 + $0x28] sm:$0xff]
    %v138 = vld [vmem:[#allocation5 + $0x30] sm:$0xff]
    %v139 = vld [vmem:[#allocation5 + $0x38] sm:$0xff]
    %v140 = vld [vmem:[#allocation5 + $0x40] sm:$0xff]
    %v141 = vld [vmem:[#allocation5 + $0x48] sm:$0xff]
    %v142 = vld [vmem:[#allocation5 + $0x50] sm:$0xff]
    %v143 = vld [vmem:[#allocation5 + $0x58] sm:$0xff]
    %v144 = vld [vmem:[#allocation5 + $0x60] sm:$0xff]
    %v145 = vld [vmem:[#allocation5 + $0x68] sm:$0xff]
    %v146 = vld [vmem:[#allocation5 + $0x70] sm:$0xff]
    %v147 = vld [vmem:[#allocation5 + $0x78] sm:$0xff]
    %v148 = vld [vmem:[#allocation5 + $0x80] sm:$0xff]
    %v149 = vld [vmem:[#allocation5 + $0x88] sm:$0xff]
    %v150 = vld [vmem:[#allocation5 + $0x90] sm:$0xff]
    %v151 = vld [vmem:[#allocation5 + $0x98] sm:$0xff]
    %v152 = vld [vmem:[#allocation5 + $0xa0] sm:$0xff]
    %v153 = vld [vmem:[#allocation5 + $0xa8] sm:$0xff]
    %v154 = vld [vmem:[#allocation5 + $0xb0] sm:$0xff]
    %v155 = vld [vmem:[#allocation5 + $0xb8] sm:$0xff]
    %v156 = vld [vmem:[#allocation5 + $0xc0] sm:$0xff]
    %v157 = vld [vmem:[#allocation5 + $0xc8] sm:$0xff]
    %v158 = vld [vmem:[#allocation5 + $0xd0] sm:$0xff]
    %v159 = vld [vmem:[#allocation5 + $0xd8] sm:$0xff]
    %v160 = vld [vmem:[#allocation5 + $0xe0] sm:$0xff]
    %v161 = vld [vmem:[#allocation5 + $0xe8] sm:$0xff]
    %v162 = vld [vmem:[#allocation5 + $0xf0] sm:$0xff]
    %v163 = vld [vmem:[#allocation5 + $0xf8] sm:$0xff]
    %v164 = vld [vmem:[#allocation5 + $0x100] sm:$0xff]
    %v165 = vld [vmem:[#allocation5 + $0x108] sm:$0xff]
    %v166 = vld [vmem:[#allocation5 + $0x110] sm:$0xff]
    %v167 = vld [vmem:[#allocation5 + $0x118] sm:$0xff]
    %v168 = vld [vmem:[#allocation7] sm:$0xff]
    %v169 = vld [vmem:[#allocation7 + $0x8] sm:$0x1]
    %v172 = vlaneseq
    %v173 = vshrl.u32 %v172, 7
    %v174 = vsub.s32 0, %v173
    %v175 = vrot.slane %v168, %v174
    %v176 = vlaneseq
    %v177 = vshrl.u32 %v176, 7
    %v178 = vsub.s32 1, %v177
    %v179 = vrot.slane %v168, %v178
    %v180 = vlaneseq
    %v181 = vshrl.u32 %v180, 7
    %v182 = vsub.s32 2, %v181
    %v183 = vrot.slane %v168, %v182
    %v184 = vlaneseq
    %v185 = vshrl.u32 %v184, 7
    %v186 = vsub.s32 3, %v185
    %v187 = vrot.slane %v168, %v186
    %v188 = vlaneseq
    %v189 = vshrl.u32 %v188, 7
    %v190 = vsub.s32 4, %v189
    %v191 = vrot.slane %v168, %v190
    %v192 = vlaneseq
    %v193 = vshrl.u32 %v192, 7
    %v194 = vsub.s32 5, %v193
    %v195 = vrot.slane %v168, %v194
    %v196 = vlaneseq
    %v197 = vshrl.u32 %v196, 7
    %v198 = vsub.s32 6, %v197
    %v199 = vrot.slane %v168, %v198
    %v200 = vlaneseq
    %v201 = vshrl.u32 %v200, 7
    %v202 = vsub.s32 7, %v201
    %v203 = vrot.slane %v168, %v202
    %v204 = vlaneseq
    %v205 = vshrl.u32 %v204, 7
    %v206 = vsub.s32 0, %v205
    %v207 = vrot.slane %v169, %v206
    %v218 = vsel %vm122, %v131, 0
    %220 = vmatprep.subr.mxu0 0.0
    %221 = vmatpush1.msra.mxu0 0.0
    %222 = vmatprep.subr.mxu0 0.0
    %223 = vmatpush1.msra.mxu0 0.0
    %224 = vmatprep.subr.mxu0 0.0
    %225 = vmatpush1.msra.mxu0 0.0
    %226 = vmatprep.subr.mxu0 0.0
    %227 = vmatpush1.msra.mxu0 0.0
    %228 = vmatprep.subr.mxu0 0.0
    %229 = vmatpush1.msra.mxu0 0.0
    %230 = vmatprep.subr.mxu0 0.0
    %231 = vmatpush1.msra.mxu0 0.0
    %232 = vmatprep.subr.mxu0 0.0
    %233 = vmatpush1.msra.mxu0 0.0
    %234 = vmatprep.subr.mxu0 0.0
    %235 = vmatpush1.msra.mxu0 0.0
    %236 = vmatprep.subr.mxu0 0.0
    %237 = vmatpush1.msra.mxu0 0.0
    %238 = vmatprep.subr.mxu0 0.0
    %239 = vmatpush1.msra.mxu0 0.0
    %240 = vmatprep.subr.mxu0 0.0
    %241 = vmatpush1.msra.mxu0 0.0
    %242 = vmatprep.subr.mxu0 0.0
    %243 = vmatpush1.msra.mxu0 0.0
    %244 = vmatprep.subr.mxu0 %v160
    %245 = vmatpush1.msra.mxu0 %v159
    %246 = vmatprep.subr.mxu0 %v151
    %247 = vmatpush1.msra.mxu0 %v150
    %248 = vmatprep.subr.mxu0 %v142
    %249 = vmatpush1.msra.mxu0 %v141
    %250 = vmatprep.subr.mxu0 %v133
    %251 = vmatpush1.msra.mxu0 %v132
    %252 = vmatprep.subr.mxu0 0.0
    %253 = vmatpush2.msra.mxu0 0.0
    %254 = vmatprep.subr.mxu0 0.0
    %255 = vmatpush2.msra.mxu0 0.0
    %256 = vmatprep.subr.mxu0 0.0
    %257 = vmatpush2.msra.mxu0 0.0
    %258 = vmatprep.subr.mxu0 0.0
    %259 = vmatpush2.msra.mxu0 0.0
    %260 = vmatprep.subr.mxu0 0.0
    %261 = vmatpush2.msra.mxu0 0.0
    %262 = vmatprep.subr.mxu0 0.0
    %263 = vmatpush2.msra.mxu0 0.0
    %264 = vmatprep.subr.mxu0 0.0
    %265 = vmatpush2.msra.mxu0 0.0
    %266 = vmatprep.subr.mxu0 0.0
    %267 = vmatpush2.msra.mxu0 0.0
    %268 = vmatprep.subr.mxu0 0.0
    %269 = vmatpush2.msra.mxu0 0.0
    %270 = vmatprep.subr.mxu0 0.0
    %271 = vmatpush2.msra.mxu0 0.0
    %272 = vmatprep.subr.mxu0 0.0
    %273 = vmatpush2.msra.mxu0 0.0
    %274 = vmatprep.subr.mxu0 0.0
    %275 = vmatpush2.msra.mxu0 0.0
    %276 = vmatprep.subr.mxu0 0.0
    %277 = vmatpush2.msra.mxu0 0.0
    %278 = vmatprep.subr.mxu0 0.0
    %279 = vmatpush2.msra.mxu0 0.0
    %280 = vmatprep.subr.mxu0 0.0
    %281 = vmatpush2.msra.mxu0 0.0
    %282 = vmatprep.subr.mxu0 0.0
    %283 = vmatpush2.msra.mxu0 0.0
    %284 = vmatprep.mubr.f32.mxu0 0.0
    %285 = vmatmul.mubr.f32.gmra.mxu0 %v218
    %v286 = vpop.f32.mrf.mxu0
    %v287 = vadd.f32 %v175, %v286
    %v288 = vpop.f32.mrf.mxu0
    %v289 = vadd.f32 %v179, %v288
    %290 = vdwg.mxu0
    %291 = vmatprep.subr.mxu0 0.0
    %292 = vmatpush1.msra.mxu0 0.0
    %293 = vmatprep.subr.mxu0 0.0
    %294 = vmatpush1.msra.mxu0 0.0
    %295 = vmatprep.subr.mxu0 0.0
    %296 = vmatpush1.msra.mxu0 0.0
    %297 = vmatprep.subr.mxu0 0.0
    %298 = vmatpush1.msra.mxu0 0.0
    %299 = vmatprep.subr.mxu0 0.0
    %300 = vmatpush1.msra.mxu0 0.0
    %301 = vmatprep.subr.mxu0 0.0
    %302 = vmatpush1.msra.mxu0 0.0
    %303 = vmatprep.subr.mxu0 0.0
    %304 = vmatpush1.msra.mxu0 0.0
    %305 = vmatprep.subr.mxu0 0.0
    %306 = vmatpush1.msra.mxu0 0.0
    %307 = vmatprep.subr.mxu0 0.0
    %308 = vmatpush1.msra.mxu0 0.0
    %309 = vmatprep.subr.mxu0 0.0
    %310 = vmatpush1.msra.mxu0 0.0
    %311 = vmatprep.subr.mxu0 0.0
    %312 = vmatpush1.msra.mxu0 0.0
    %313 = vmatprep.subr.mxu0 0.0
    %314 = vmatpush1.msra.mxu0 0.0
    %315 = vmatprep.subr.mxu0 %v162
    %316 = vmatpush1.msra.mxu0 %v161
    %317 = vmatprep.subr.mxu0 %v153
    %318 = vmatpush1.msra.mxu0 %v152
    %319 = vmatprep.subr.mxu0 %v144
    %320 = vmatpush1.msra.mxu0 %v143
    %321 = vmatprep.subr.mxu0 %v135
    %322 = vmatpush1.msra.mxu0 %v134
    %323 = vmatprep.subr.mxu0 0.0
    %324 = vmatpush2.msra.mxu0 0.0
    %325 = vmatprep.subr.mxu0 0.0
    %326 = vmatpush2.msra.mxu0 0.0
    %327 = vmatprep.subr.mxu0 0.0
    %328 = vmatpush2.msra.mxu0 0.0
    %329 = vmatprep.subr.mxu0 0.0
    %330 = vmatpush2.msra.mxu0 0.0
    %331 = vmatprep.subr.mxu0 0.0
    %332 = vmatpush2.msra.mxu0 0.0
    %333 = vmatprep.subr.mxu0 0.0
    %334 = vmatpush2.msra.mxu0 0.0
    %335 = vmatprep.subr.mxu0 0.0
    %336 = vmatpush2.msra.mxu0 0.0
    %337 = vmatprep.subr.mxu0 0.0
    %338 = vmatpush2.msra.mxu0 0.0
    %339 = vmatprep.subr.mxu0 0.0
    %340 = vmatpush2.msra.mxu0 0.0
    %341 = vmatprep.subr.mxu0 0.0
    %342 = vmatpush2.msra.mxu0 0.0
    %343 = vmatprep.subr.mxu0 0.0
    %344 = vmatpush2.msra.mxu0 0.0
    %345 = vmatprep.subr.mxu0 0.0
    %346 = vmatpush2.msra.mxu0 0.0
    %347 = vmatprep.subr.mxu0 0.0
    %348 = vmatpush2.msra.mxu0 0.0
    %349 = vmatprep.subr.mxu0 0.0
    %350 = vmatpush2.msra.mxu0 0.0
    %351 = vmatprep.subr.mxu0 0.0
    %352 = vmatpush2.msra.mxu0 0.0
    %353 = vmatprep.subr.mxu0 0.0
    %354 = vmatpush2.msra.mxu0 0.0
    %355 = vmatprep.mubr.f32.mxu0 0.0
    %356 = vmatmul.mubr.f32.gmra.mxu0 %v218
    %v357 = vpop.f32.mrf.mxu0
    %v358 = vadd.f32 %v183, %v357
    %v359 = vpop.f32.mrf.mxu0
    %v360 = vadd.f32 %v187, %v359
    %361 = vdwg.mxu0
    %362 = vmatprep.subr.mxu0 0.0
    %363 = vmatpush1.msra.mxu0 0.0
    %364 = vmatprep.subr.mxu0 0.0
    %365 = vmatpush1.msra.mxu0 0.0
    %366 = vmatprep.subr.mxu0 0.0
    %367 = vmatpush1.msra.mxu0 0.0
    %368 = vmatprep.subr.mxu0 0.0
    %369 = vmatpush1.msra.mxu0 0.0
    %370 = vmatprep.subr.mxu0 0.0
    %371 = vmatpush1.msra.mxu0 0.0
    %372 = vmatprep.subr.mxu0 0.0
    %373 = vmatpush1.msra.mxu0 0.0
    %374 = vmatprep.subr.mxu0 0.0
    %375 = vmatpush1.msra.mxu0 0.0
    %376 = vmatprep.subr.mxu0 0.0
    %377 = vmatpush1.msra.mxu0 0.0
    %378 = vmatprep.subr.mxu0 0.0
    %379 = vmatpush1.msra.mxu0 0.0
    %380 = vmatprep.subr.mxu0 0.0
    %381 = vmatpush1.msra.mxu0 0.0
    %382 = vmatprep.subr.mxu0 0.0
    %383 = vmatpush1.msra.mxu0 0.0
    %384 = vmatprep.subr.mxu0 0.0
    %385 = vmatpush1.msra.mxu0 0.0
    %386 = vmatprep.subr.mxu0 %v164
    %387 = vmatpush1.msra.mxu0 %v163
    %388 = vmatprep.subr.mxu0 %v155
    %389 = vmatpush1.msra.mxu0 %v154
    %390 = vmatprep.subr.mxu0 %v146
    %391 = vmatpush1.msra.mxu0 %v145
    %392 = vmatprep.subr.mxu0 %v137
    %393 = vmatpush1.msra.mxu0 %v136
    %394 = vmatprep.subr.mxu0 0.0
    %395 = vmatpush2.msra.mxu0 0.0
    %396 = vmatprep.subr.mxu0 0.0
    %397 = vmatpush2.msra.mxu0 0.0
    %398 = vmatprep.subr.mxu0 0.0
    %399 = vmatpush2.msra.mxu0 0.0
    %400 = vmatprep.subr.mxu0 0.0
    %401 = vmatpush2.msra.mxu0 0.0
    %402 = vmatprep.subr.mxu0 0.0
    %403 = vmatpush2.msra.mxu0 0.0
    %404 = vmatprep.subr.mxu0 0.0
    %405 = vmatpush2.msra.mxu0 0.0
    %406 = vmatprep.subr.mxu0 0.0
    %407 = vmatpush2.msra.mxu0 0.0
    %408 = vmatprep.subr.mxu0 0.0
    %409 = vmatpush2.msra.mxu0 0.0
    %410 = vmatprep.subr.mxu0 0.0
    %411 = vmatpush2.msra.mxu0 0.0
    %412 = vmatprep.subr.mxu0 0.0
    %413 = vmatpush2.msra.mxu0 0.0
    %414 = vmatprep.subr.mxu0 0.0
    %415 = vmatpush2.msra.mxu0 0.0
    %416 = vmatprep.subr.mxu0 0.0
    %417 = vmatpush2.msra.mxu0 0.0
    %418 = vmatprep.subr.mxu0 0.0
    %419 = vmatpush2.msra.mxu0 0.0
    %420 = vmatprep.subr.mxu0 0.0
    %421 = vmatpush2.msra.mxu0 0.0
    %422 = vmatprep.subr.mxu0 0.0
    %423 = vmatpush2.msra.mxu0 0.0
    %424 = vmatprep.subr.mxu0 0.0
    %425 = vmatpush2.msra.mxu0 0.0
    %426 = vmatprep.mubr.f32.mxu0 0.0
    %427 = vmatmul.mubr.f32.gmra.mxu0 %v218
    %v428 = vpop.f32.mrf.mxu0
    %v429 = vadd.f32 %v191, %v428
    %v430 = vpop.f32.mrf.mxu0
    %v431 = vadd.f32 %v195, %v430
    %432 = vdwg.mxu0
    %433 = vmatprep.subr.mxu0 0.0
    %434 = vmatpush1.msra.mxu0 0.0
    %435 = vmatprep.subr.mxu0 0.0
    %436 = vmatpush1.msra.mxu0 0.0
    %437 = vmatprep.subr.mxu0 0.0
    %438 = vmatpush1.msra.mxu0 0.0
    %439 = vmatprep.subr.mxu0 0.0
    %440 = vmatpush1.msra.mxu0 0.0
    %441 = vmatprep.subr.mxu0 0.0
    %442 = vmatpush1.msra.mxu0 0.0
    %443 = vmatprep.subr.mxu0 0.0
    %444 = vmatpush1.msra.mxu0 0.0
    %445 = vmatprep.subr.mxu0 0.0
    %446 = vmatpush1.msra.mxu0 0.0
    %447 = vmatprep.subr.mxu0 0.0
    %448 = vmatpush1.msra.mxu0 0.0
    %449 = vmatprep.subr.mxu0 0.0
    %450 = vmatpush1.msra.mxu0 0.0
    %451 = vmatprep.subr.mxu0 0.0
    %452 = vmatpush1.msra.mxu0 0.0
    %453 = vmatprep.subr.mxu0 0.0
    %454 = vmatpush1.msra.mxu0 0.0
    %455 = vmatprep.subr.mxu0 0.0
    %456 = vmatpush1.msra.mxu0 0.0
    %457 = vmatprep.subr.mxu0 %v166
    %458 = vmatpush1.msra.mxu0 %v165
    %459 = vmatprep.subr.mxu0 %v157
    %460 = vmatpush1.msra.mxu0 %v156
    %461 = vmatprep.subr.mxu0 %v148
    %462 = vmatpush1.msra.mxu0 %v147
    %463 = vmatprep.subr.mxu0 %v139
    %464 = vmatpush1.msra.mxu0 %v138
    %465 = vmatprep.subr.mxu0 0.0
    %466 = vmatpush2.msra.mxu0 0.0
    %467 = vmatprep.subr.mxu0 0.0
    %468 = vmatpush2.msra.mxu0 0.0
    %469 = vmatprep.subr.mxu0 0.0
    %470 = vmatpush2.msra.mxu0 0.0
    %471 = vmatprep.subr.mxu0 0.0
    %472 = vmatpush2.msra.mxu0 0.0
    %473 = vmatprep.subr.mxu0 0.0
    %474 = vmatpush2.msra.mxu0 0.0
    %475 = vmatprep.subr.mxu0 0.0
    %476 = vmatpush2.msra.mxu0 0.0
    %477 = vmatprep.subr.mxu0 0.0
    %478 = vmatpush2.msra.mxu0 0.0
    %479 = vmatprep.subr.mxu0 0.0
    %480 = vmatpush2.msra.mxu0 0.0
    %481 = vmatprep.subr.mxu0 0.0
    %482 = vmatpush2.msra.mxu0 0.0
    %483 = vmatprep.subr.mxu0 0.0
    %484 = vmatpush2.msra.mxu0 0.0
    %485 = vmatprep.subr.mxu0 0.0
    %486 = vmatpush2.msra.mxu0 0.0
    %487 = vmatprep.subr.mxu0 0.0
    %488 = vmatpush2.msra.mxu0 0.0
    %489 = vmatprep.subr.mxu0 0.0
    %490 = vmatpush2.msra.mxu0 0.0
    %491 = vmatprep.subr.mxu0 0.0
    %492 = vmatpush2.msra.mxu0 0.0
    %493 = vmatprep.subr.mxu0 0.0
    %494 = vmatpush2.msra.mxu0 0.0
    %495 = vmatprep.subr.mxu0 0.0
    %496 = vmatpush2.msra.mxu0 0.0
    %497 = vmatprep.mubr.f32.mxu0 0.0
    %498 = vmatmul.mubr.f32.gmra.mxu0 %v218
    %v499 = vpop.f32.mrf.mxu0
    %v500 = vadd.f32 %v199, %v499
    %v501 = vpop.f32.mrf.mxu0
    %v502 = vadd.f32 %v203, %v501
    %503 = vdwg.mxu0
    %504 = vmatprep.subr.mxu0 0.0
    %505 = vmatpush1.msra.mxu0 0.0
    %506 = vmatprep.subr.mxu0 0.0
    %507 = vmatpush1.msra.mxu0 0.0
    %508 = vmatprep.subr.mxu0 0.0
    %509 = vmatpush1.msra.mxu0 0.0
    %510 = vmatprep.subr.mxu0 0.0
    %511 = vmatpush1.msra.mxu0 0.0
    %512 = vmatprep.subr.mxu0 0.0
    %513 = vmatpush1.msra.mxu0 0.0
    %514 = vmatprep.subr.mxu0 0.0
    %515 = vmatpush1.msra.mxu0 0.0
    %516 = vmatprep.subr.mxu0 0.0
    %517 = vmatpush1.msra.mxu0 0.0
    %518 = vmatprep.subr.mxu0 0.0
    %519 = vmatpush1.msra.mxu0 0.0
    %520 = vmatprep.subr.mxu0 0.0
    %521 = vmatpush1.msra.mxu0 0.0
    %522 = vmatprep.subr.mxu0 0.0
    %523 = vmatpush1.msra.mxu0 0.0
    %524 = vmatprep.subr.mxu0 0.0
    %525 = vmatpush1.msra.mxu0 0.0
    %526 = vmatprep.subr.mxu0 0.0
    %527 = vmatpush1.msra.mxu0 0.0
    %528 = vmatprep.subr.mxu0 0.0
    %529 = vmatpush1.msra.mxu0 %v167
    %530 = vmatprep.subr.mxu0 0.0
    %531 = vmatpush1.msra.mxu0 %v158
    %532 = vmatprep.subr.mxu0 0.0
    %533 = vmatpush1.msra.mxu0 %v149
    %534 = vmatprep.subr.mxu0 0.0
    %535 = vmatpush1.msra.mxu0 %v140
    %536 = vmatprep.subr.mxu0 0.0
    %537 = vmatpush2.msra.mxu0 0.0
    %538 = vmatprep.subr.mxu0 0.0
    %539 = vmatpush2.msra.mxu0 0.0
    %540 = vmatprep.subr.mxu0 0.0
    %541 = vmatpush2.msra.mxu0 0.0
    %542 = vmatprep.subr.mxu0 0.0
    %543 = vmatpush2.msra.mxu0 0.0
    %544 = vmatprep.subr.mxu0 0.0
    %545 = vmatpush2.msra.mxu0 0.0
    %546 = vmatprep.subr.mxu0 0.0
    %547 = vmatpush2.msra.mxu0 0.0
    %548 = vmatprep.subr.mxu0 0.0
    %549 = vmatpush2.msra.mxu0 0.0
    %550 = vmatprep.subr.mxu0 0.0
    %551 = vmatpush2.msra.mxu0 0.0
    %552 = vmatprep.subr.mxu0 0.0
    %553 = vmatpush2.msra.mxu0 0.0
    %554 = vmatprep.subr.mxu0 0.0
    %555 = vmatpush2.msra.mxu0 0.0
    %556 = vmatprep.subr.mxu0 0.0
    %557 = vmatpush2.msra.mxu0 0.0
    %558 = vmatprep.subr.mxu0 0.0
    %559 = vmatpush2.msra.mxu0 0.0
    %560 = vmatprep.subr.mxu0 0.0
    %561 = vmatpush2.msra.mxu0 0.0
    %562 = vmatprep.subr.mxu0 0.0
    %563 = vmatpush2.msra.mxu0 0.0
    %564 = vmatprep.subr.mxu0 0.0
    %565 = vmatpush2.msra.mxu0 0.0
    %566 = vmatprep.subr.mxu0 0.0
    %567 = vmatpush2.msra.mxu0 0.0
    %568 = vmatprep.mubr.f32.mxu0 0.0
    %569 = vmatmul.mubr.f32.gmra.mxu0 %v218
    %v570 = vpop.f32.mrf.mxu0
    %v571 = vadd.f32 %v207, %v570
    %v572 = vpop.f32.mrf.mxu0
    %573 = vdwg.mxu0
    %v574 = vld [vmem:[#allocation8] sm:$0xff]
    %v575 = vld [vmem:[#allocation8 + $0x8] sm:$0xff]
    %v576 = vld [vmem:[#allocation8 + $0x10] sm:$0xff]
    %v577 = vld [vmem:[#allocation8 + $0x18] sm:$0xff]
    %v578 = vld [vmem:[#allocation8 + $0x20] sm:$0xff]
    %v579 = vld [vmem:[#allocation8 + $0x28] sm:$0xff]
    %v580 = vld [vmem:[#allocation8 + $0x30] sm:$0xff]
    %v581 = vld [vmem:[#allocation8 + $0x38] sm:$0xff]
    %v582 = vld [vmem:[#allocation8 + $0x40] sm:$0xff]
    %v583 = vld [vmem:[#allocation8 + $0x48] sm:$0xff]
    %v584 = vld [vmem:[#allocation8 + $0x50] sm:$0xff]
    %v585 = vld [vmem:[#allocation8 + $0x58] sm:$0xff]
    %v586 = vld [vmem:[#allocation8 + $0x60] sm:$0xff]
    %v587 = vld [vmem:[#allocation8 + $0x68] sm:$0xff]
    %v588 = vld [vmem:[#allocation8 + $0x70] sm:$0xff]
    %v589 = vld [vmem:[#allocation8 + $0x78] sm:$0xff]
    %v590 = vld [vmem:[#allocation8 + $0x80] sm:$0xff]
    %v591 = vld [vmem:[#allocation8 + $0x88] sm:$0xff]
    %v592 = vld [vmem:[#allocation8 + $0x90] sm:$0xff]
    %v593 = vld [vmem:[#allocation8 + $0x98] sm:$0xff]
    %v594 = vld [vmem:[#allocation8 + $0xa0] sm:$0xff]
    %v595 = vld [vmem:[#allocation8 + $0xa8] sm:$0xff]
    %v596 = vld [vmem:[#allocation8 + $0xb0] sm:$0xff]
    %v597 = vld [vmem:[#allocation8 + $0xb8] sm:$0xff]
    %v598 = vld [vmem:[#allocation8 + $0xc0] sm:$0xff]
    %v599 = vld [vmem:[#allocation8 + $0xc8] sm:$0xff]
    %v600 = vld [vmem:[#allocation8 + $0xd0] sm:$0xff]
    %v601 = vld [vmem:[#allocation8 + $0xd8] sm:$0xff]
    %v602 = vld [vmem:[#allocation8 + $0xe0] sm:$0xff]
    %v603 = vld [vmem:[#allocation8 + $0xe8] sm:$0xff]
    %v604 = vld [vmem:[#allocation8 + $0xf0] sm:$0xff]
    %v605 = vld [vmem:[#allocation8 + $0xf8] sm:$0xff]
    %v606 = vld [vmem:[#allocation8 + $0x100] sm:$0xff]
    %v607 = vld [vmem:[#allocation8 + $0x108] sm:$0xff]
    %v608 = vld [vmem:[#allocation8 + $0x110] sm:$0xff]
    %v609 = vld [vmem:[#allocation8 + $0x118] sm:$0xff]
    %v610 = vld [vmem:[#allocation8 + $0x120] sm:$0xff]
    %v611 = vld [vmem:[#allocation8 + $0x128] sm:$0xff]
    %v612 = vld [vmem:[#allocation8 + $0x130] sm:$0xff]
    %v613 = vld [vmem:[#allocation8 + $0x138] sm:$0xff]
    %v614 = vld [vmem:[#allocation8 + $0x140] sm:$0xff]
    %v615 = vld [vmem:[#allocation8 + $0x148] sm:$0xff]
    %v616 = vld [vmem:[#allocation8 + $0x150] sm:$0xff]
    %v617 = vld [vmem:[#allocation8 + $0x158] sm:$0xff]
    %v618 = vld [vmem:[#allocation8 + $0x160] sm:$0xff]
    %v619 = vld [vmem:[#allocation8 + $0x168] sm:$0xff]
    %v620 = vld [vmem:[#allocation8 + $0x170] sm:$0xff]
    %v621 = vld [vmem:[#allocation8 + $0x178] sm:$0xff]
    %v622 = vld [vmem:[#allocation8 + $0x180] sm:$0xff]
    %v623 = vld [vmem:[#allocation8 + $0x188] sm:$0xff]
    %v624 = vld [vmem:[#allocation8 + $0x190] sm:$0xff]
    %v625 = vld [vmem:[#allocation8 + $0x198] sm:$0xff]
    %v626 = vld [vmem:[#allocation8 + $0x1a0] sm:$0xff]
    %v627 = vld [vmem:[#allocation8 + $0x1a8] sm:$0xff]
    %v628 = vld [vmem:[#allocation8 + $0x1b0] sm:$0xff]
    %v629 = vld [vmem:[#allocation8 + $0x1b8] sm:$0xff]
    %v630 = vld [vmem:[#allocation8 + $0x1c0] sm:$0xff]
    %v631 = vld [vmem:[#allocation8 + $0x1c8] sm:$0xff]
    %v632 = vld [vmem:[#allocation8 + $0x1d0] sm:$0xff]
    %v633 = vld [vmem:[#allocation8 + $0x1d8] sm:$0xff]
    %v634 = vld [vmem:[#allocation8 + $0x1e0] sm:$0xff]
    %v635 = vld [vmem:[#allocation8 + $0x1e8] sm:$0xff]
    %v636 = vld [vmem:[#allocation8 + $0x1f0] sm:$0xff]
    %v637 = vld [vmem:[#allocation8 + $0x1f8] sm:$0xff]
    %v638 = vld [vmem:[#allocation8 + $0x200] sm:$0xff]
    %v639 = vld [vmem:[#allocation8 + $0x208] sm:$0xff]
    %v640 = vld [vmem:[#allocation8 + $0x210] sm:$0xff]
    %v641 = vld [vmem:[#allocation8 + $0x218] sm:$0xff]
    %v642 = vld [vmem:[#allocation8 + $0x220] sm:$0xff]
    %v643 = vld [vmem:[#allocation8 + $0x228] sm:$0xff]
    %v644 = vld [vmem:[#allocation8 + $0x230] sm:$0xff]
    %v645 = vld [vmem:[#allocation8 + $0x238] sm:$0xff]
    %v646 = vld [vmem:[#allocation8 + $0x240] sm:$0xff]
    %v647 = vld [vmem:[#allocation8 + $0x248] sm:$0xff]
    %v648 = vld [vmem:[#allocation8 + $0x250] sm:$0xff]
    %v649 = vld [vmem:[#allocation8 + $0x258] sm:$0xff]
    %v650 = vld [vmem:[#allocation8 + $0x260] sm:$0xff]
    %v651 = vld [vmem:[#allocation8 + $0x268] sm:$0xff]
    %v652 = vld [vmem:[#allocation8 + $0x270] sm:$0xff]
    %v653 = vld [vmem:[#allocation8 + $0x278] sm:$0xff]
    %v654 = vld [vmem:[#allocation8 + $0x280] sm:$0xff]
    %v655 = vld [vmem:[#allocation8 + $0x288] sm:$0xff]
    %v656 = vld [vmem:[#allocation8 + $0x290] sm:$0xff]
    %v657 = vld [vmem:[#allocation8 + $0x298] sm:$0xff]
    %v658 = vld [vmem:[#allocation8 + $0x2a0] sm:$0xff]
    %v659 = vld [vmem:[#allocation8 + $0x2a8] sm:$0xff]
    %v660 = vld [vmem:[#allocation8 + $0x2b0] sm:$0xff]
    %v661 = vld [vmem:[#allocation8 + $0x2b8] sm:$0xff]
    %v662 = vld [vmem:[#allocation8 + $0x2c0] sm:$0xff]
    %v663 = vld [vmem:[#allocation8 + $0x2c8] sm:$0xff]
    %v664 = vld [vmem:[#allocation8 + $0x2d0] sm:$0xff]
    %v665 = vld [vmem:[#allocation8 + $0x2d8] sm:$0xff]
    %v666 = vld [vmem:[#allocation8 + $0x2e0] sm:$0xff]
    %v667 = vld [vmem:[#allocation8 + $0x2e8] sm:$0xff]
    %v668 = vld [vmem:[#allocation8 + $0x2f0] sm:$0xff]
    %v669 = vld [vmem:[#allocation8 + $0x2f8] sm:$0xff]
    %v670 = vld [vmem:[#allocation8 + $0x300] sm:$0xff]
    %v671 = vld [vmem:[#allocation8 + $0x308] sm:$0xff]
    %v672 = vld [vmem:[#allocation8 + $0x310] sm:$0xff]
    %v673 = vld [vmem:[#allocation8 + $0x318] sm:$0xff]
    %v674 = vld [vmem:[#allocation8 + $0x320] sm:$0xff]
    %v675 = vld [vmem:[#allocation8 + $0x328] sm:$0xff]
    %v676 = vld [vmem:[#allocation8 + $0x330] sm:$0xff]
    %v677 = vld [vmem:[#allocation8 + $0x338] sm:$0xff]
    %v678 = vld [vmem:[#allocation8 + $0x340] sm:$0xff]
    %v679 = vld [vmem:[#allocation8 + $0x348] sm:$0xff]
    %v680 = vld [vmem:[#allocation8 + $0x350] sm:$0xff]
    %v681 = vld [vmem:[#allocation8 + $0x358] sm:$0xff]
    %v682 = vld [vmem:[#allocation8 + $0x360] sm:$0xff]
    %v683 = vld [vmem:[#allocation8 + $0x368] sm:$0xff]
    %v684 = vld [vmem:[#allocation8 + $0x370] sm:$0xff]
    %v685 = vld [vmem:[#allocation8 + $0x378] sm:$0xff]
    %v686 = vld [vmem:[#allocation8 + $0x380] sm:$0xff]
    %v687 = vld [vmem:[#allocation8 + $0x388] sm:$0xff]
    %v688 = vld [vmem:[#allocation8 + $0x390] sm:$0xff]
    %v689 = vld [vmem:[#allocation8 + $0x398] sm:$0xff]
    %v690 = vld [vmem:[#allocation8 + $0x3a0] sm:$0xff]
    %v691 = vld [vmem:[#allocation8 + $0x3a8] sm:$0xff]
    %v692 = vld [vmem:[#allocation8 + $0x3b0] sm:$0xff]
    %v693 = vld [vmem:[#allocation8 + $0x3b8] sm:$0xff]
    %v694 = vld [vmem:[#allocation8 + $0x3c0] sm:$0xff]
    %v695 = vld [vmem:[#allocation8 + $0x3c8] sm:$0xff]
    %v696 = vld [vmem:[#allocation8 + $0x3d0] sm:$0xff]
    %v697 = vld [vmem:[#allocation8 + $0x3d8] sm:$0xff]
    %v698 = vld [vmem:[#allocation8 + $0x3e0] sm:$0xff]
    %v699 = vld [vmem:[#allocation8 + $0x3e8] sm:$0xff]
    %v700 = vld [vmem:[#allocation8 + $0x3f0] sm:$0xff]
    %v701 = vld [vmem:[#allocation8 + $0x3f8] sm:$0xff]
    %v702 = vld [vmem:[#allocation8 + $0x400] sm:$0xff]
    %v703 = vld [vmem:[#allocation8 + $0x408] sm:$0xff]
    %v704 = vld [vmem:[#allocation8 + $0x410] sm:$0xff]
    %v705 = vld [vmem:[#allocation8 + $0x418] sm:$0xff]
    %v706 = vld [vmem:[#allocation8 + $0x420] sm:$0xff]
    %v707 = vld [vmem:[#allocation8 + $0x428] sm:$0xff]
    %v708 = vld [vmem:[#allocation8 + $0x430] sm:$0xff]
    %v709 = vld [vmem:[#allocation8 + $0x438] sm:$0xff]
    %v710 = vld [vmem:[#allocation8 + $0x440] sm:$0xff]
    %v711 = vld [vmem:[#allocation8 + $0x448] sm:$0xff]
    %v712 = vld [vmem:[#allocation8 + $0x450] sm:$0xff]
    %v713 = vld [vmem:[#allocation8 + $0x458] sm:$0xff]
    %v714 = vld [vmem:[#allocation8 + $0x460] sm:$0xff]
    %v715 = vld [vmem:[#allocation8 + $0x468] sm:$0xff]
    %v716 = vld [vmem:[#allocation8 + $0x470] sm:$0xff]
    %v717 = vld [vmem:[#allocation8 + $0x478] sm:$0xff]
    %v718 = vlaneseq
    %v719 = vshrl.u32 %v718, 7
    %v720 = vsub.s32 0, %v719
    %v721 = vrot.slane %v287, %v720
    %v722 = vlaneseq
    %v723 = vshrl.u32 %v722, 7
    %v724 = vsub.s32 0, %v723
    %v725 = vrot.slane %v289, %v724
    %v726 = vlaneseq
    %v727 = vshrl.u32 %v726, 7
    %v728 = vsub.s32 0, %v727
    %v729 = vrot.slane %v358, %v728
    %v730 = vlaneseq
    %v731 = vshrl.u32 %v730, 7
    %v732 = vsub.s32 0, %v731
    %v733 = vrot.slane %v360, %v732
    %v734 = vlaneseq
    %v735 = vshrl.u32 %v734, 7
    %v736 = vsub.s32 0, %v735
    %v737 = vrot.slane %v429, %v736
    %v738 = vlaneseq
    %v739 = vshrl.u32 %v738, 7
    %v740 = vsub.s32 0, %v739
    %v741 = vrot.slane %v431, %v740
    %v742 = vlaneseq
    %v743 = vshrl.u32 %v742, 7
    %v744 = vsub.s32 0, %v743
    %v745 = vrot.slane %v500, %v744
    %v746 = vlaneseq
    %v747 = vshrl.u32 %v746, 7
    %v748 = vsub.s32 0, %v747
    %v749 = vrot.slane %v502, %v748
    %v750 = vlaneseq
    %v751 = vshrl.u32 %v750, 7
    %v752 = vsub.s32 0, %v751
    %v753 = vrot.slane %v571, %v752
    %v754 = vmul.f32 %v574, %v721
    %v755 = vmul.f32 %v575, %v725
    %v756 = vmul.f32 %v576, %v729
    %v757 = vmul.f32 %v577, %v733
    %v758 = vmul.f32 %v578, %v737
    %v759 = vmul.f32 %v579, %v741
    %v760 = vmul.f32 %v580, %v745
    %v761 = vmul.f32 %v581, %v749
    %v762 = vmul.f32 %v582, %v753
    %v763 = vmul.f32 %v583, %v721
    %v764 = vmul.f32 %v584, %v725
    %v765 = vmul.f32 %v585, %v729
    %v766 = vmul.f32 %v586, %v733
    %v767 = vmul.f32 %v587, %v737
    %v768 = vmul.f32 %v588, %v741
    %v769 = vmul.f32 %v589, %v745
    %v770 = vmul.f32 %v590, %v749
    %v771 = vmul.f32 %v591, %v753
    %v772 = vmul.f32 %v592, %v721
    %v773 = vmul.f32 %v593, %v725
    %v774 = vmul.f32 %v594, %v729
    %v775 = vmul.f32 %v595, %v733
    %v776 = vmul.f32 %v596, %v737
    %v777 = vmul.f32 %v597, %v741
    %v778 = vmul.f32 %v598, %v745
    %v779 = vmul.f32 %v599, %v749
    %v780 = vmul.f32 %v600, %v753
    %v781 = vmul.f32 %v601, %v721
    %v782 = vmul.f32 %v602, %v725
    %v783 = vmul.f32 %v603, %v729
    %v784 = vmul.f32 %v604, %v733
    %v785 = vmul.f32 %v605, %v737
    %v786 = vmul.f32 %v606, %v741
    %v787 = vmul.f32 %v607, %v745
    %v788 = vmul.f32 %v608, %v749
    %v789 = vmul.f32 %v609, %v753
    %v790 = vmul.f32 %v610, %v721
    %v791 = vmul.f32 %v611, %v725
    %v792 = vmul.f32 %v612, %v729
    %v793 = vmul.f32 %v613, %v733
    %v794 = vmul.f32 %v614, %v737
    %v795 = vmul.f32 %v615, %v741
    %v796 = vmul.f32 %v616, %v745
    %v797 = vmul.f32 %v617, %v749
    %v798 = vmul.f32 %v618, %v753
    %v799 = vmul.f32 %v619, %v721
    %v800 = vmul.f32 %v620, %v725
    %v801 = vmul.f32 %v621, %v729
    %v802 = vmul.f32 %v622, %v733
    %v803 = vmul.f32 %v623, %v737
    %v804 = vmul.f32 %v624, %v741
    %v805 = vmul.f32 %v625, %v745
    %v806 = vmul.f32 %v626, %v749
    %v807 = vmul.f32 %v627, %v753
    %v808 = vmul.f32 %v628, %v721
    %v809 = vmul.f32 %v629, %v725
    %v810 = vmul.f32 %v630, %v729
    %v811 = vmul.f32 %v631, %v733
    %v812 = vmul.f32 %v632, %v737
    %v813 = vmul.f32 %v633, %v741
    %v814 = vmul.f32 %v634, %v745
    %v815 = vmul.f32 %v635, %v749
    %v816 = vmul.f32 %v636, %v753
    %v817 = vmul.f32 %v637, %v721
    %v818 = vmul.f32 %v638, %v725
    %v819 = vmul.f32 %v639, %v729
    %v820 = vmul.f32 %v640, %v733
    %v821 = vmul.f32 %v641, %v737
    %v822 = vmul.f32 %v642, %v741
    %v823 = vmul.f32 %v643, %v745
    %v824 = vmul.f32 %v644, %v749
    %v825 = vmul.f32 %v645, %v753
    %v826 = vmul.f32 %v646, %v721
    %v827 = vmul.f32 %v647, %v725
    %v828 = vmul.f32 %v648, %v729
    %v829 = vmul.f32 %v649, %v733
    %v830 = vmul.f32 %v650, %v737
    %v831 = vmul.f32 %v651, %v741
    %v832 = vmul.f32 %v652, %v745
    %v833 = vmul.f32 %v653, %v749
    %v834 = vmul.f32 %v654, %v753
    %v835 = vmul.f32 %v655, %v721
    %v836 = vmul.f32 %v656, %v725
    %v837 = vmul.f32 %v657, %v729
    %v838 = vmul.f32 %v658, %v733
    %v839 = vmul.f32 %v659, %v737
    %v840 = vmul.f32 %v660, %v741
    %v841 = vmul.f32 %v661, %v745
    %v842 = vmul.f32 %v662, %v749
    %v843 = vmul.f32 %v663, %v753
    %v844 = vmul.f32 %v664, %v721
    %v845 = vmul.f32 %v665, %v725
    %v846 = vmul.f32 %v666, %v729
    %v847 = vmul.f32 %v667, %v733
    %v848 = vmul.f32 %v668, %v737
    %v849 = vmul.f32 %v669, %v741
    %v850 = vmul.f32 %v670, %v745
    %v851 = vmul.f32 %v671, %v749
    %v852 = vmul.f32 %v672, %v753
    %v853 = vmul.f32 %v673, %v721
    %v854 = vmul.f32 %v674, %v725
    %v855 = vmul.f32 %v675, %v729
    %v856 = vmul.f32 %v676, %v733
    %v857 = vmul.f32 %v677, %v737
    %v858 = vmul.f32 %v678, %v741
    %v859 = vmul.f32 %v679, %v745
    %v860 = vmul.f32 %v680, %v749
    %v861 = vmul.f32 %v681, %v753
    %v862 = vmul.f32 %v682, %v721
    %v863 = vmul.f32 %v683, %v725
    %v864 = vmul.f32 %v684, %v729
    %v865 = vmul.f32 %v685, %v733
    %v866 = vmul.f32 %v686, %v737
    %v867 = vmul.f32 %v687, %v741
    %v868 = vmul.f32 %v688, %v745
    %v869 = vmul.f32 %v689, %v749
    %v870 = vmul.f32 %v690, %v753
    %v871 = vmul.f32 %v691, %v721
    %v872 = vmul.f32 %v692, %v725
    %v873 = vmul.f32 %v693, %v729
    %v874 = vmul.f32 %v694, %v733
    %v875 = vmul.f32 %v695, %v737
    %v876 = vmul.f32 %v696, %v741
    %v877 = vmul.f32 %v697, %v745
    %v878 = vmul.f32 %v698, %v749
    %v879 = vmul.f32 %v699, %v753
    %v880 = vmul.f32 %v700, %v721
    %v881 = vmul.f32 %v701, %v725
    %v882 = vmul.f32 %v702, %v729
    %v883 = vmul.f32 %v703, %v733
    %v884 = vmul.f32 %v704, %v737
    %v885 = vmul.f32 %v705, %v741
    %v886 = vmul.f32 %v706, %v745
    %v887 = vmul.f32 %v707, %v749
    %v888 = vmul.f32 %v708, %v753
    %v889 = vmul.f32 %v709, %v721
    %v890 = vmul.f32 %v710, %v725
    %v891 = vmul.f32 %v711, %v729
    %v892 = vmul.f32 %v712, %v733
    %v893 = vmul.f32 %v713, %v737
    %v894 = vmul.f32 %v714, %v741
    %v895 = vmul.f32 %v715, %v745
    %v896 = vmul.f32 %v716, %v749
    %v897 = vmul.f32 %v717, %v753
    %v898 = vld [vmem:[#allocation13] sm:$0xff]
    %v899 = vld [vmem:[#allocation13 + $0x8] sm:$0xff]
    %v900 = vld [vmem:[#allocation13 + $0x10] sm:$0xff]
    %v901 = vld [vmem:[#allocation13 + $0x18] sm:$0xff]
    %v902 = vld [vmem:[#allocation13 + $0x20] sm:$0xff]
    %v903 = vld [vmem:[#allocation13 + $0x28] sm:$0xff]
    %v904 = vld [vmem:[#allocation13 + $0x30] sm:$0xff]
    %v905 = vld [vmem:[#allocation13 + $0x38] sm:$0xff]
    %v906 = vld [vmem:[#allocation13 + $0x40] sm:$0xff]
    %v907 = vld [vmem:[#allocation13 + $0x48] sm:$0xff]
    %v908 = vld [vmem:[#allocation13 + $0x50] sm:$0xff]
    %v909 = vld [vmem:[#allocation13 + $0x58] sm:$0xff]
    %v910 = vld [vmem:[#allocation13 + $0x60] sm:$0xff]
    %v911 = vld [vmem:[#allocation13 + $0x68] sm:$0xff]
    %v912 = vld [vmem:[#allocation13 + $0x70] sm:$0xff]
    %v913 = vld [vmem:[#allocation13 + $0x78] sm:$0xff]
    %v914 = vld [vmem:[#allocation10] sm:$0xff]
    %v915 = vld [vmem:[#allocation10 + $0x8] sm:$0xff]
    %v916 = vld [vmem:[#allocation10 + $0x10] sm:$0xff]
    %v917 = vld [vmem:[#allocation10 + $0x18] sm:$0xff]
    %v918 = vld [vmem:[#allocation10 + $0x20] sm:$0xff]
    %v919 = vld [vmem:[#allocation10 + $0x28] sm:$0xff]
    %v920 = vld [vmem:[#allocation10 + $0x30] sm:$0xff]
    %v921 = vld [vmem:[#allocation10 + $0x38] sm:$0xff]
    %v922 = vld [vmem:[#allocation10 + $0x40] sm:$0xff]
    %v923 = vld [vmem:[#allocation10 + $0x48] sm:$0xff]
    %v924 = vld [vmem:[#allocation10 + $0x50] sm:$0xff]
    %v925 = vld [vmem:[#allocation10 + $0x58] sm:$0xff]
    %v926 = vld [vmem:[#allocation10 + $0x60] sm:$0xff]
    %v927 = vld [vmem:[#allocation10 + $0x68] sm:$0xff]
    %v928 = vld [vmem:[#allocation10 + $0x70] sm:$0xff]
    %v929 = vld [vmem:[#allocation10 + $0x78] sm:$0xff]
    %v930 = vld [vmem:[#allocation10 + $0x80] sm:$0xff]
    %v931 = vld [vmem:[#allocation10 + $0x88] sm:$0xff]
    %v932 = vld [vmem:[#allocation10 + $0x90] sm:$0xff]
    %v933 = vld [vmem:[#allocation10 + $0x98] sm:$0xff]
    %v934 = vld [vmem:[#allocation10 + $0xa0] sm:$0xff]
    %v935 = vld [vmem:[#allocation10 + $0xa8] sm:$0xff]
    %v936 = vld [vmem:[#allocation10 + $0xb0] sm:$0xff]
    %v937 = vld [vmem:[#allocation10 + $0xb8] sm:$0xff]
    %v938 = vld [vmem:[#allocation10 + $0xc0] sm:$0xff]
    %v939 = vld [vmem:[#allocation10 + $0xc8] sm:$0xff]
    %v940 = vld [vmem:[#allocation10 + $0xd0] sm:$0xff]
    %v941 = vld [vmem:[#allocation10 + $0xd8] sm:$0xff]
    %v942 = vld [vmem:[#allocation10 + $0xe0] sm:$0xff]
    %v943 = vld [vmem:[#allocation10 + $0xe8] sm:$0xff]
    %v944 = vld [vmem:[#allocation10 + $0xf0] sm:$0xff]
    %v945 = vld [vmem:[#allocation10 + $0xf8] sm:$0xff]
    %v946 = vld [vmem:[#allocation10 + $0x100] sm:$0xff]
    %v947 = vld [vmem:[#allocation10 + $0x108] sm:$0xff]
    %v948 = vld [vmem:[#allocation10 + $0x110] sm:$0xff]
    %v949 = vld [vmem:[#allocation10 + $0x118] sm:$0xff]
    %v950 = vld [vmem:[#allocation10 + $0x120] sm:$0xff]
    %v951 = vld [vmem:[#allocation10 + $0x128] sm:$0xff]
    %v952 = vld [vmem:[#allocation10 + $0x130] sm:$0xff]
    %v953 = vld [vmem:[#allocation10 + $0x138] sm:$0xff]
    %v954 = vld [vmem:[#allocation10 + $0x140] sm:$0xff]
    %v955 = vld [vmem:[#allocation10 + $0x148] sm:$0xff]
    %v956 = vld [vmem:[#allocation10 + $0x150] sm:$0xff]
    %v957 = vld [vmem:[#allocation10 + $0x158] sm:$0xff]
    %v958 = vld [vmem:[#allocation10 + $0x160] sm:$0xff]
    %v959 = vld [vmem:[#allocation10 + $0x168] sm:$0xff]
    %v960 = vld [vmem:[#allocation10 + $0x170] sm:$0xff]
    %v961 = vld [vmem:[#allocation10 + $0x178] sm:$0xff]
    %v962 = vld [vmem:[#allocation10 + $0x180] sm:$0xff]
    %v963 = vld [vmem:[#allocation10 + $0x188] sm:$0xff]
    %v964 = vld [vmem:[#allocation10 + $0x190] sm:$0xff]
    %v965 = vld [vmem:[#allocation10 + $0x198] sm:$0xff]
    %v966 = vld [vmem:[#allocation10 + $0x1a0] sm:$0xff]
    %v967 = vld [vmem:[#allocation10 + $0x1a8] sm:$0xff]
    %v968 = vld [vmem:[#allocation10 + $0x1b0] sm:$0xff]
    %v969 = vld [vmem:[#allocation10 + $0x1b8] sm:$0xff]
    %v970 = vld [vmem:[#allocation10 + $0x1c0] sm:$0xff]
    %v971 = vld [vmem:[#allocation10 + $0x1c8] sm:$0xff]
    %v972 = vld [vmem:[#allocation10 + $0x1d0] sm:$0xff]
    %v973 = vld [vmem:[#allocation10 + $0x1d8] sm:$0xff]
    %v974 = vld [vmem:[#allocation10 + $0x1e0] sm:$0xff]
    %v975 = vld [vmem:[#allocation10 + $0x1e8] sm:$0xff]
    %v976 = vld [vmem:[#allocation10 + $0x1f0] sm:$0xff]
    %v977 = vld [vmem:[#allocation10 + $0x1f8] sm:$0xff]
    %v978 = vld [vmem:[#allocation10 + $0x200] sm:$0xff]
    %v979 = vld [vmem:[#allocation10 + $0x208] sm:$0xff]
    %v980 = vld [vmem:[#allocation10 + $0x210] sm:$0xff]
    %v981 = vld [vmem:[#allocation10 + $0x218] sm:$0xff]
    %v982 = vld [vmem:[#allocation10 + $0x220] sm:$0xff]
    %v983 = vld [vmem:[#allocation10 + $0x228] sm:$0xff]
    %v984 = vld [vmem:[#allocation10 + $0x230] sm:$0xff]
    %v985 = vld [vmem:[#allocation10 + $0x238] sm:$0xff]
    %v986 = vld [vmem:[#allocation10 + $0x240] sm:$0xff]
    %v987 = vld [vmem:[#allocation10 + $0x248] sm:$0xff]
    %v988 = vld [vmem:[#allocation10 + $0x250] sm:$0xff]
    %v989 = vld [vmem:[#allocation10 + $0x258] sm:$0xff]
    %v990 = vld [vmem:[#allocation10 + $0x260] sm:$0xff]
    %v991 = vld [vmem:[#allocation10 + $0x268] sm:$0xff]
    %v992 = vld [vmem:[#allocation10 + $0x270] sm:$0xff]
    %v993 = vld [vmem:[#allocation10 + $0x278] sm:$0xff]
    %v994 = vld [vmem:[#allocation10 + $0x280] sm:$0xff]
    %v995 = vld [vmem:[#allocation10 + $0x288] sm:$0xff]
    %v996 = vld [vmem:[#allocation10 + $0x290] sm:$0xff]
    %v997 = vld [vmem:[#allocation10 + $0x298] sm:$0xff]
    %v998 = vld [vmem:[#allocation10 + $0x2a0] sm:$0xff]
    %v999 = vld [vmem:[#allocation10 + $0x2a8] sm:$0xff]
    %v1000 = vld [vmem:[#allocation10 + $0x2b0] sm:$0xff]
    %v1001 = vld [vmem:[#allocation10 + $0x2b8] sm:$0xff]
    %v1002 = vld [vmem:[#allocation10 + $0x2c0] sm:$0xff]
    %v1003 = vld [vmem:[#allocation10 + $0x2c8] sm:$0xff]
    %v1004 = vld [vmem:[#allocation10 + $0x2d0] sm:$0xff]
    %v1005 = vld [vmem:[#allocation10 + $0x2d8] sm:$0xff]
    %v1006 = vld [vmem:[#allocation10 + $0x2e0] sm:$0xff]
    %v1007 = vld [vmem:[#allocation10 + $0x2e8] sm:$0xff]
    %v1008 = vld [vmem:[#allocation10 + $0x2f0] sm:$0xff]
    %v1009 = vld [vmem:[#allocation10 + $0x2f8] sm:$0xff]
    %v1010 = vld [vmem:[#allocation10 + $0x300] sm:$0xff]
    %v1011 = vld [vmem:[#allocation10 + $0x308] sm:$0xff]
    %v1012 = vld [vmem:[#allocation10 + $0x310] sm:$0xff]
    %v1013 = vld [vmem:[#allocation10 + $0x318] sm:$0xff]
    %v1014 = vld [vmem:[#allocation10 + $0x320] sm:$0xff]
    %v1015 = vld [vmem:[#allocation10 + $0x328] sm:$0xff]
    %v1016 = vld [vmem:[#allocation10 + $0x330] sm:$0xff]
    %v1017 = vld [vmem:[#allocation10 + $0x338] sm:$0xff]
    %v1018 = vld [vmem:[#allocation10 + $0x340] sm:$0xff]
    %v1019 = vld [vmem:[#allocation10 + $0x348] sm:$0xff]
    %v1020 = vld [vmem:[#allocation10 + $0x350] sm:$0xff]
    %v1021 = vld [vmem:[#allocation10 + $0x358] sm:$0xff]
    %v1022 = vld [vmem:[#allocation10 + $0x360] sm:$0xff]
    %v1023 = vld [vmem:[#allocation10 + $0x368] sm:$0xff]
    %v1024 = vld [vmem:[#allocation10 + $0x370] sm:$0xff]
    %v1025 = vld [vmem:[#allocation10 + $0x378] sm:$0xff]
    %v1026 = vld [vmem:[#allocation10 + $0x380] sm:$0xff]
    %v1027 = vld [vmem:[#allocation10 + $0x388] sm:$0xff]
    %v1028 = vld [vmem:[#allocation10 + $0x390] sm:$0xff]
    %v1029 = vld [vmem:[#allocation10 + $0x398] sm:$0xff]
    %v1030 = vld [vmem:[#allocation10 + $0x3a0] sm:$0xff]
    %v1031 = vld [vmem:[#allocation10 + $0x3a8] sm:$0xff]
    %v1032 = vld [vmem:[#allocation10 + $0x3b0] sm:$0xff]
    %v1033 = vld [vmem:[#allocation10 + $0x3b8] sm:$0xff]
    %v1034 = vld [vmem:[#allocation10 + $0x3c0] sm:$0xff]
    %v1035 = vld [vmem:[#allocation10 + $0x3c8] sm:$0xff]
    %v1036 = vld [vmem:[#allocation10 + $0x3d0] sm:$0xff]
    %v1037 = vld [vmem:[#allocation10 + $0x3d8] sm:$0xff]
    %v1038 = vld [vmem:[#allocation10 + $0x3e0] sm:$0xff]
    %v1039 = vld [vmem:[#allocation10 + $0x3e8] sm:$0xff]
    %v1040 = vld [vmem:[#allocation10 + $0x3f0] sm:$0xff]
    %v1041 = vld [vmem:[#allocation10 + $0x3f8] sm:$0xff]
    %v1042 = vld [vmem:[#allocation10 + $0x400] sm:$0xff]
    %v1043 = vld [vmem:[#allocation10 + $0x408] sm:$0xff]
    %v1044 = vld [vmem:[#allocation10 + $0x410] sm:$0xff]
    %v1045 = vld [vmem:[#allocation10 + $0x418] sm:$0xff]
    %v1046 = vld [vmem:[#allocation10 + $0x420] sm:$0xff]
    %v1047 = vld [vmem:[#allocation10 + $0x428] sm:$0xff]
    %v1048 = vld [vmem:[#allocation10 + $0x430] sm:$0xff]
    %v1049 = vld [vmem:[#allocation10 + $0x438] sm:$0xff]
    %v1050 = vld [vmem:[#allocation10 + $0x440] sm:$0xff]
    %v1051 = vld [vmem:[#allocation10 + $0x448] sm:$0xff]
    %v1052 = vld [vmem:[#allocation10 + $0x450] sm:$0xff]
    %v1053 = vld [vmem:[#allocation10 + $0x458] sm:$0xff]
    %v1054 = vld [vmem:[#allocation10 + $0x460] sm:$0xff]
    %v1055 = vld [vmem:[#allocation10 + $0x468] sm:$0xff]
    %v1056 = vld [vmem:[#allocation10 + $0x470] sm:$0xff]
    %v1057 = vld [vmem:[#allocation10 + $0x478] sm:$0xff]
    %1058 = vmatprep.subr.mxu0 0.0
    %1059 = vmatpush1.msra.mxu0 %v929
    %1060 = vmatprep.subr.mxu0 0.0
    %1061 = vmatpush1.msra.mxu0 %v928
    %1062 = vmatprep.subr.mxu0 0.0
    %1063 = vmatpush1.msra.mxu0 %v927
    %1064 = vmatprep.subr.mxu0 0.0
    %1065 = vmatpush1.msra.mxu0 %v926
    %1066 = vmatprep.subr.mxu0 0.0
    %1067 = vmatpush1.msra.mxu0 %v925
    %1068 = vmatprep.subr.mxu0 0.0
    %1069 = vmatpush1.msra.mxu0 %v924
    %1070 = vmatprep.subr.mxu0 0.0
    %1071 = vmatpush1.msra.mxu0 %v923
    %1072 = vmatprep.subr.mxu0 0.0
    %1073 = vmatpush1.msra.mxu0 %v922
    %1074 = vmatprep.subr.mxu0 0.0
    %1075 = vmatpush1.msra.mxu0 %v921
    %1076 = vmatprep.subr.mxu0 0.0
    %1077 = vmatpush1.msra.mxu0 %v920
    %1078 = vmatprep.subr.mxu0 0.0
    %1079 = vmatpush1.msra.mxu0 %v919
    %1080 = vmatprep.subr.mxu0 0.0
    %1081 = vmatpush1.msra.mxu0 %v918
    %1082 = vmatprep.subr.mxu0 0.0
    %1083 = vmatpush1.msra.mxu0 %v917
    %1084 = vmatprep.subr.mxu0 0.0
    %1085 = vmatpush1.msra.mxu0 %v916
    %1086 = vmatprep.subr.mxu0 0.0
    %1087 = vmatpush1.msra.mxu0 %v915
    %1088 = vmatprep.subr.mxu0 0.0
    %1089 = vmatpush1.msra.mxu0 %v914
    %1090 = vmatprep.subr.mxu0 0.0
    %1091 = vmatpush2.msra.mxu0 %v945
    %1092 = vmatprep.subr.mxu0 0.0
    %1093 = vmatpush2.msra.mxu0 %v944
    %1094 = vmatprep.subr.mxu0 0.0
    %1095 = vmatpush2.msra.mxu0 %v943
    %1096 = vmatprep.subr.mxu0 0.0
    %1097 = vmatpush2.msra.mxu0 %v942
    %1098 = vmatprep.subr.mxu0 0.0
    %1099 = vmatpush2.msra.mxu0 %v941
    %1100 = vmatprep.subr.mxu0 0.0
    %1101 = vmatpush2.msra.mxu0 %v940
    %1102 = vmatprep.subr.mxu0 0.0
    %1103 = vmatpush2.msra.mxu0 %v939
    %1104 = vmatprep.subr.mxu0 0.0
    %1105 = vmatpush2.msra.mxu0 %v938
    %1106 = vmatprep.subr.mxu0 0.0
    %1107 = vmatpush2.msra.mxu0 %v937
    %1108 = vmatprep.subr.mxu0 0.0
    %1109 = vmatpush2.msra.mxu0 %v936
    %1110 = vmatprep.subr.mxu0 0.0
    %1111 = vmatpush2.msra.mxu0 %v935
    %1112 = vmatprep.subr.mxu0 0.0
    %1113 = vmatpush2.msra.mxu0 %v934
    %1114 = vmatprep.subr.mxu0 0.0
    %1115 = vmatpush2.msra.mxu0 %v933
    %1116 = vmatprep.subr.mxu0 0.0
    %1117 = vmatpush2.msra.mxu0 %v932
    %1118 = vmatprep.subr.mxu0 0.0
    %1119 = vmatpush2.msra.mxu0 %v931
    %1120 = vmatprep.subr.mxu0 0.0
    %1121 = vmatpush2.msra.mxu0 %v930
    %1122 = vmatprep.mubr.f32.mxu0 %v755
    %1123 = vmatmul.mubr.f32.gmra.mxu0 %v754
    %v1124 = vpop.f32.mrf.mxu0
    %v1125 = vadd.f32 0.0, %v1124
    %v1126 = vpop.f32.mrf.mxu0
    %1127 = vmatprep.mubr.f32.mxu0 %v764
    %1128 = vmatmul.mubr.f32.gmra.mxu0 %v763
    %v1129 = vpop.f32.mrf.mxu0
    %v1130 = vadd.f32 0.0, %v1129
    %v1131 = vpop.f32.mrf.mxu0
    %1132 = vmatprep.mubr.f32.mxu0 %v773
    %1133 = vmatmul.mubr.f32.gmra.mxu0 %v772
    %v1134 = vpop.f32.mrf.mxu0
    %v1135 = vadd.f32 0.0, %v1134
    %v1136 = vpop.f32.mrf.mxu0
    %1137 = vmatprep.mubr.f32.mxu0 %v782
    %1138 = vmatmul.mubr.f32.gmra.mxu0 %v781
    %v1139 = vpop.f32.mrf.mxu0
    %v1140 = vadd.f32 0.0, %v1139
    %v1141 = vpop.f32.mrf.mxu0
    %1142 = vmatprep.mubr.f32.mxu0 %v791
    %1143 = vmatmul.mubr.f32.gmra.mxu0 %v790
    %v1144 = vpop.f32.mrf.mxu0
    %v1145 = vadd.f32 0.0, %v1144
    %v1146 = vpop.f32.mrf.mxu0
    %1147 = vmatprep.mubr.f32.mxu0 %v800
    %1148 = vmatmul.mubr.f32.gmra.mxu0 %v799
    %v1149 = vpop.f32.mrf.mxu0
    %v1150 = vadd.f32 0.0, %v1149
    %v1151 = vpop.f32.mrf.mxu0
    %1152 = vmatprep.mubr.f32.mxu0 %v809
    %1153 = vmatmul.mubr.f32.gmra.mxu0 %v808
    %v1154 = vpop.f32.mrf.mxu0
    %v1155 = vadd.f32 0.0, %v1154
    %v1156 = vpop.f32.mrf.mxu0
    %1157 = vmatprep.mubr.f32.mxu0 %v818
    %1158 = vmatmul.mubr.f32.gmra.mxu0 %v817
    %v1159 = vpop.f32.mrf.mxu0
    %v1160 = vadd.f32 0.0, %v1159
    %v1161 = vpop.f32.mrf.mxu0
    %1162 = vmatprep.mubr.f32.mxu0 %v827
    %1163 = vmatmul.mubr.f32.gmra.mxu0 %v826
    %v1164 = vpop.f32.mrf.mxu0
    %v1165 = vadd.f32 0.0, %v1164
    %v1166 = vpop.f32.mrf.mxu0
    %1167 = vmatprep.mubr.f32.mxu0 %v836
    %1168 = vmatmul.mubr.f32.gmra.mxu0 %v835
    %v1169 = vpop.f32.mrf.mxu0
    %v1170 = vadd.f32 0.0, %v1169
    %v1171 = vpop.f32.mrf.mxu0
    %1172 = vmatprep.mubr.f32.mxu0 %v845
    %1173 = vmatmul.mubr.f32.gmra.mxu0 %v844
    %v1174 = vpop.f32.mrf.mxu0
    %v1175 = vadd.f32 0.0, %v1174
    %v1176 = vpop.f32.mrf.mxu0
    %1177 = vmatprep.mubr.f32.mxu0 %v854
    %1178 = vmatmul.mubr.f32.gmra.mxu0 %v853
    %v1179 = vpop.f32.mrf.mxu0
    %v1180 = vadd.f32 0.0, %v1179
    %v1181 = vpop.f32.mrf.mxu0
    %1182 = vmatprep.mubr.f32.mxu0 %v863
    %1183 = vmatmul.mubr.f32.gmra.mxu0 %v862
    %v1184 = vpop.f32.mrf.mxu0
    %v1185 = vadd.f32 0.0, %v1184
    %v1186 = vpop.f32.mrf.mxu0
    %1187 = vmatprep.mubr.f32.mxu0 %v872
    %1188 = vmatmul.mubr.f32.gmra.mxu0 %v871
    %v1189 = vpop.f32.mrf.mxu0
    %v1190 = vadd.f32 0.0, %v1189
    %v1191 = vpop.f32.mrf.mxu0
    %1192 = vmatprep.mubr.f32.mxu0 %v881
    %1193 = vmatmul.mubr.f32.gmra.mxu0 %v880
    %v1194 = vpop.f32.mrf.mxu0
    %v1195 = vadd.f32 0.0, %v1194
    %v1196 = vpop.f32.mrf.mxu0
    %1197 = vmatprep.mubr.f32.mxu0 %v890
    %1198 = vmatmul.mubr.f32.gmra.mxu0 %v889
    %v1199 = vpop.f32.mrf.mxu0
    %v1200 = vadd.f32 0.0, %v1199
    %v1201 = vpop.f32.mrf.mxu0
    %1202 = vdwg.mxu0
    %1203 = vmatprep.subr.mxu0 0.0
    %1204 = vmatpush1.msra.mxu0 %v961
    %1205 = vmatprep.subr.mxu0 0.0
    %1206 = vmatpush1.msra.mxu0 %v960
    %1207 = vmatprep.subr.mxu0 0.0
    %1208 = vmatpush1.msra.mxu0 %v959
    %1209 = vmatprep.subr.mxu0 0.0
    %1210 = vmatpush1.msra.mxu0 %v958
    %1211 = vmatprep.subr.mxu0 0.0
    %1212 = vmatpush1.msra.mxu0 %v957
    %1213 = vmatprep.subr.mxu0 0.0
    %1214 = vmatpush1.msra.mxu0 %v956
    %1215 = vmatprep.subr.mxu0 0.0
    %1216 = vmatpush1.msra.mxu0 %v955
    %1217 = vmatprep.subr.mxu0 0.0
    %1218 = vmatpush1.msra.mxu0 %v954
    %1219 = vmatprep.subr.mxu0 0.0
    %1220 = vmatpush1.msra.mxu0 %v953
    %1221 = vmatprep.subr.mxu0 0.0
    %1222 = vmatpush1.msra.mxu0 %v952
    %1223 = vmatprep.subr.mxu0 0.0
    %1224 = vmatpush1.msra.mxu0 %v951
    %1225 = vmatprep.subr.mxu0 0.0
    %1226 = vmatpush1.msra.mxu0 %v950
    %1227 = vmatprep.subr.mxu0 0.0
    %1228 = vmatpush1.msra.mxu0 %v949
    %1229 = vmatprep.subr.mxu0 0.0
    %1230 = vmatpush1.msra.mxu0 %v948
    %1231 = vmatprep.subr.mxu0 0.0
    %1232 = vmatpush1.msra.mxu0 %v947
    %1233 = vmatprep.subr.mxu0 0.0
    %1234 = vmatpush1.msra.mxu0 %v946
    %1235 = vmatprep.subr.mxu0 0.0
    %1236 = vmatpush2.msra.mxu0 %v977
    %1237 = vmatprep.subr.mxu0 0.0
    %1238 = vmatpush2.msra.mxu0 %v976
    %1239 = vmatprep.subr.mxu0 0.0
    %1240 = vmatpush2.msra.mxu0 %v975
    %1241 = vmatprep.subr.mxu0 0.0
    %1242 = vmatpush2.msra.mxu0 %v974
    %1243 = vmatprep.subr.mxu0 0.0
    %1244 = vmatpush2.msra.mxu0 %v973
    %1245 = vmatprep.subr.mxu0 0.0
    %1246 = vmatpush2.msra.mxu0 %v972
    %1247 = vmatprep.subr.mxu0 0.0
    %1248 = vmatpush2.msra.mxu0 %v971
    %1249 = vmatprep.subr.mxu0 0.0
    %1250 = vmatpush2.msra.mxu0 %v970
    %1251 = vmatprep.subr.mxu0 0.0
    %1252 = vmatpush2.msra.mxu0 %v969
    %1253 = vmatprep.subr.mxu0 0.0
    %1254 = vmatpush2.msra.mxu0 %v968
    %1255 = vmatprep.subr.mxu0 0.0
    %1256 = vmatpush2.msra.mxu0 %v967
    %1257 = vmatprep.subr.mxu0 0.0
    %1258 = vmatpush2.msra.mxu0 %v966
    %1259 = vmatprep.subr.mxu0 0.0
    %1260 = vmatpush2.msra.mxu0 %v965
    %1261 = vmatprep.subr.mxu0 0.0
    %1262 = vmatpush2.msra.mxu0 %v964
    %1263 = vmatprep.subr.mxu0 0.0
    %1264 = vmatpush2.msra.mxu0 %v963
    %1265 = vmatprep.subr.mxu0 0.0
    %1266 = vmatpush2.msra.mxu0 %v962
    %1267 = vmatprep.mubr.f32.mxu0 %v757
    %1268 = vmatmul.mubr.f32.gmra.mxu0 %v756
    %v1269 = vpop.f32.mrf.mxu0
    %v1270 = vadd.f32 %v1125, %v1269
    %v1271 = vpop.f32.mrf.mxu0
    %1272 = vmatprep.mubr.f32.mxu0 %v766
    %1273 = vmatmul.mubr.f32.gmra.mxu0 %v765
    %v1274 = vpop.f32.mrf.mxu0
    %v1275 = vadd.f32 %v1130, %v1274
    %v1276 = vpop.f32.mrf.mxu0
    %1277 = vmatprep.mubr.f32.mxu0 %v775
    %1278 = vmatmul.mubr.f32.gmra.mxu0 %v774
    %v1279 = vpop.f32.mrf.mxu0
    %v1280 = vadd.f32 %v1135, %v1279
    %v1281 = vpop.f32.mrf.mxu0
    %1282 = vmatprep.mubr.f32.mxu0 %v784
    %1283 = vmatmul.mubr.f32.gmra.mxu0 %v783
    %v1284 = vpop.f32.mrf.mxu0
    %v1285 = vadd.f32 %v1140, %v1284
    %v1286 = vpop.f32.mrf.mxu0
    %1287 = vmatprep.mubr.f32.mxu0 %v793
    %1288 = vmatmul.mubr.f32.gmra.mxu0 %v792
    %v1289 = vpop.f32.mrf.mxu0
    %v1290 = vadd.f32 %v1145, %v1289
    %v1291 = vpop.f32.mrf.mxu0
    %1292 = vmatprep.mubr.f32.mxu0 %v802
    %1293 = vmatmul.mubr.f32.gmra.mxu0 %v801
    %v1294 = vpop.f32.mrf.mxu0
    %v1295 = vadd.f32 %v1150, %v1294
    %v1296 = vpop.f32.mrf.mxu0
    %1297 = vmatprep.mubr.f32.mxu0 %v811
    %1298 = vmatmul.mubr.f32.gmra.mxu0 %v810
    %v1299 = vpop.f32.mrf.mxu0
    %v1300 = vadd.f32 %v1155, %v1299
    %v1301 = vpop.f32.mrf.mxu0
    %1302 = vmatprep.mubr.f32.mxu0 %v820
    %1303 = vmatmul.mubr.f32.gmra.mxu0 %v819
    %v1304 = vpop.f32.mrf.mxu0
    %v1305 = vadd.f32 %v1160, %v1304
    %v1306 = vpop.f32.mrf.mxu0
    %1307 = vmatprep.mubr.f32.mxu0 %v829
    %1308 = vmatmul.mubr.f32.gmra.mxu0 %v828
    %v1309 = vpop.f32.mrf.mxu0
    %v1310 = vadd.f32 %v1165, %v1309
    %v1311 = vpop.f32.mrf.mxu0
    %1312 = vmatprep.mubr.f32.mxu0 %v838
    %1313 = vmatmul.mubr.f32.gmra.mxu0 %v837
    %v1314 = vpop.f32.mrf.mxu0
    %v1315 = vadd.f32 %v1170, %v1314
    %v1316 = vpop.f32.mrf.mxu0
    %1317 = vmatprep.mubr.f32.mxu0 %v847
    %1318 = vmatmul.mubr.f32.gmra.mxu0 %v846
    %v1319 = vpop.f32.mrf.mxu0
    %v1320 = vadd.f32 %v1175, %v1319
    %v1321 = vpop.f32.mrf.mxu0
    %1322 = vmatprep.mubr.f32.mxu0 %v856
    %1323 = vmatmul.mubr.f32.gmra.mxu0 %v855
    %v1324 = vpop.f32.mrf.mxu0
    %v1325 = vadd.f32 %v1180, %v1324
    %v1326 = vpop.f32.mrf.mxu0
    %1327 = vmatprep.mubr.f32.mxu0 %v865
    %1328 = vmatmul.mubr.f32.gmra.mxu0 %v864
    %v1329 = vpop.f32.mrf.mxu0
    %v1330 = vadd.f32 %v1185, %v1329
    %v1331 = vpop.f32.mrf.mxu0
    %1332 = vmatprep.mubr.f32.mxu0 %v874
    %1333 = vmatmul.mubr.f32.gmra.mxu0 %v873
    %v1334 = vpop.f32.mrf.mxu0
    %v1335 = vadd.f32 %v1190, %v1334
    %v1336 = vpop.f32.mrf.mxu0
    %1337 = vmatprep.mubr.f32.mxu0 %v883
    %1338 = vmatmul.mubr.f32.gmra.mxu0 %v882
    %v1339 = vpop.f32.mrf.mxu0
    %v1340 = vadd.f32 %v1195, %v1339
    %v1341 = vpop.f32.mrf.mxu0
    %1342 = vmatprep.mubr.f32.mxu0 %v892
    %1343 = vmatmul.mubr.f32.gmra.mxu0 %v891
    %v1344 = vpop.f32.mrf.mxu0
    %v1345 = vadd.f32 %v1200, %v1344
    %v1346 = vpop.f32.mrf.mxu0
    %1347 = vdwg.mxu0
    %1348 = vmatprep.subr.mxu0 0.0
    %1349 = vmatpush1.msra.mxu0 %v993
    %1350 = vmatprep.subr.mxu0 0.0
    %1351 = vmatpush1.msra.mxu0 %v992
    %1352 = vmatprep.subr.mxu0 0.0
    %1353 = vmatpush1.msra.mxu0 %v991
    %1354 = vmatprep.subr.mxu0 0.0
    %1355 = vmatpush1.msra.mxu0 %v990
    %1356 = vmatprep.subr.mxu0 0.0
    %1357 = vmatpush1.msra.mxu0 %v989
    %1358 = vmatprep.subr.mxu0 0.0
    %1359 = vmatpush1.msra.mxu0 %v988
    %1360 = vmatprep.subr.mxu0 0.0
    %1361 = vmatpush1.msra.mxu0 %v987
    %1362 = vmatprep.subr.mxu0 0.0
    %1363 = vmatpush1.msra.mxu0 %v986
    %1364 = vmatprep.subr.mxu0 0.0
    %1365 = vmatpush1.msra.mxu0 %v985
    %1366 = vmatprep.subr.mxu0 0.0
    %1367 = vmatpush1.msra.mxu0 %v984
    %1368 = vmatprep.subr.mxu0 0.0
    %1369 = vmatpush1.msra.mxu0 %v983
    %1370 = vmatprep.subr.mxu0 0.0
    %1371 = vmatpush1.msra.mxu0 %v982
    %1372 = vmatprep.subr.mxu0 0.0
    %1373 = vmatpush1.msra.mxu0 %v981
    %1374 = vmatprep.subr.mxu0 0.0
    %1375 = vmatpush1.msra.mxu0 %v980
    %1376 = vmatprep.subr.mxu0 0.0
    %1377 = vmatpush1.msra.mxu0 %v979
    %1378 = vmatprep.subr.mxu0 0.0
    %1379 = vmatpush1.msra.mxu0 %v978
    %1380 = vmatprep.subr.mxu0 0.0
    %1381 = vmatpush2.msra.mxu0 %v1009
    %1382 = vmatprep.subr.mxu0 0.0
    %1383 = vmatpush2.msra.mxu0 %v1008
    %1384 = vmatprep.subr.mxu0 0.0
    %1385 = vmatpush2.msra.mxu0 %v1007
    %1386 = vmatprep.subr.mxu0 0.0
    %1387 = vmatpush2.msra.mxu0 %v1006
    %1388 = vmatprep.subr.mxu0 0.0
    %1389 = vmatpush2.msra.mxu0 %v1005
    %1390 = vmatprep.subr.mxu0 0.0
    %1391 = vmatpush2.msra.mxu0 %v1004
    %1392 = vmatprep.subr.mxu0 0.0
    %1393 = vmatpush2.msra.mxu0 %v1003
    %1394 = vmatprep.subr.mxu0 0.0
    %1395 = vmatpush2.msra.mxu0 %v1002
    %1396 = vmatprep.subr.mxu0 0.0
    %1397 = vmatpush2.msra.mxu0 %v1001
    %1398 = vmatprep.subr.mxu0 0.0
    %1399 = vmatpush2.msra.mxu0 %v1000
    %1400 = vmatprep.subr.mxu0 0.0
    %1401 = vmatpush2.msra.mxu0 %v999
    %1402 = vmatprep.subr.mxu0 0.0
    %1403 = vmatpush2.msra.mxu0 %v998
    %1404 = vmatprep.subr.mxu0 0.0
    %1405 = vmatpush2.msra.mxu0 %v997
    %1406 = vmatprep.subr.mxu0 0.0
    %1407 = vmatpush2.msra.mxu0 %v996
    %1408 = vmatprep.subr.mxu0 0.0
    %1409 = vmatpush2.msra.mxu0 %v995
    %1410 = vmatprep.subr.mxu0 0.0
    %1411 = vmatpush2.msra.mxu0 %v994
    %1412 = vmatprep.mubr.f32.mxu0 %v759
    %1413 = vmatmul.mubr.f32.gmra.mxu0 %v758
    %v1414 = vpop.f32.mrf.mxu0
    %v1415 = vadd.f32 %v1270, %v1414
    %v1416 = vpop.f32.mrf.mxu0
    %1417 = vmatprep.mubr.f32.mxu0 %v768
    %1418 = vmatmul.mubr.f32.gmra.mxu0 %v767
    %v1419 = vpop.f32.mrf.mxu0
    %v1420 = vadd.f32 %v1275, %v1419
    %v1421 = vpop.f32.mrf.mxu0
    %1422 = vmatprep.mubr.f32.mxu0 %v777
    %1423 = vmatmul.mubr.f32.gmra.mxu0 %v776
    %v1424 = vpop.f32.mrf.mxu0
    %v1425 = vadd.f32 %v1280, %v1424
    %v1426 = vpop.f32.mrf.mxu0
    %1427 = vmatprep.mubr.f32.mxu0 %v786
    %1428 = vmatmul.mubr.f32.gmra.mxu0 %v785
    %v1429 = vpop.f32.mrf.mxu0
    %v1430 = vadd.f32 %v1285, %v1429
    %v1431 = vpop.f32.mrf.mxu0
    %1432 = vmatprep.mubr.f32.mxu0 %v795
    %1433 = vmatmul.mubr.f32.gmra.mxu0 %v794
    %v1434 = vpop.f32.mrf.mxu0
    %v1435 = vadd.f32 %v1290, %v1434
    %v1436 = vpop.f32.mrf.mxu0
    %1437 = vmatprep.mubr.f32.mxu0 %v804
    %1438 = vmatmul.mubr.f32.gmra.mxu0 %v803
    %v1439 = vpop.f32.mrf.mxu0
    %v1440 = vadd.f32 %v1295, %v1439
    %v1441 = vpop.f32.mrf.mxu0
    %1442 = vmatprep.mubr.f32.mxu0 %v813
    %1443 = vmatmul.mubr.f32.gmra.mxu0 %v812
    %v1444 = vpop.f32.mrf.mxu0
    %v1445 = vadd.f32 %v1300, %v1444
    %v1446 = vpop.f32.mrf.mxu0
    %1447 = vmatprep.mubr.f32.mxu0 %v822
    %1448 = vmatmul.mubr.f32.gmra.mxu0 %v821
    %v1449 = vpop.f32.mrf.mxu0
    %v1450 = vadd.f32 %v1305, %v1449
    %v1451 = vpop.f32.mrf.mxu0
    %1452 = vmatprep.mubr.f32.mxu0 %v831
    %1453 = vmatmul.mubr.f32.gmra.mxu0 %v830
    %v1454 = vpop.f32.mrf.mxu0
    %v1455 = vadd.f32 %v1310, %v1454
    %v1456 = vpop.f32.mrf.mxu0
    %1457 = vmatprep.mubr.f32.mxu0 %v840
    %1458 = vmatmul.mubr.f32.gmra.mxu0 %v839
    %v1459 = vpop.f32.mrf.mxu0
    %v1460 = vadd.f32 %v1315, %v1459
    %v1461 = vpop.f32.mrf.mxu0
    %1462 = vmatprep.mubr.f32.mxu0 %v849
    %1463 = vmatmul.mubr.f32.gmra.mxu0 %v848
    %v1464 = vpop.f32.mrf.mxu0
    %v1465 = vadd.f32 %v1320, %v1464
    %v1466 = vpop.f32.mrf.mxu0
    %1467 = vmatprep.mubr.f32.mxu0 %v858
    %1468 = vmatmul.mubr.f32.gmra.mxu0 %v857
    %v1469 = vpop.f32.mrf.mxu0
    %v1470 = vadd.f32 %v1325, %v1469
    %v1471 = vpop.f32.mrf.mxu0
    %1472 = vmatprep.mubr.f32.mxu0 %v867
    %1473 = vmatmul.mubr.f32.gmra.mxu0 %v866
    %v1474 = vpop.f32.mrf.mxu0
    %v1475 = vadd.f32 %v1330, %v1474
    %v1476 = vpop.f32.mrf.mxu0
    %1477 = vmatprep.mubr.f32.mxu0 %v876
    %1478 = vmatmul.mubr.f32.gmra.mxu0 %v875
    %v1479 = vpop.f32.mrf.mxu0
    %v1480 = vadd.f32 %v1335, %v1479
    %v1481 = vpop.f32.mrf.mxu0
    %1482 = vmatprep.mubr.f32.mxu0 %v885
    %1483 = vmatmul.mubr.f32.gmra.mxu0 %v884
    %v1484 = vpop.f32.mrf.mxu0
    %v1485 = vadd.f32 %v1340, %v1484
    %v1486 = vpop.f32.mrf.mxu0
    %1487 = vmatprep.mubr.f32.mxu0 %v894
    %1488 = vmatmul.mubr.f32.gmra.mxu0 %v893
    %v1489 = vpop.f32.mrf.mxu0
    %v1490 = vadd.f32 %v1345, %v1489
    %v1491 = vpop.f32.mrf.mxu0
    %1492 = vdwg.mxu0
    %1493 = vmatprep.subr.mxu0 0.0
    %1494 = vmatpush1.msra.mxu0 %v1025
    %1495 = vmatprep.subr.mxu0 0.0
    %1496 = vmatpush1.msra.mxu0 %v1024
    %1497 = vmatprep.subr.mxu0 0.0
    %1498 = vmatpush1.msra.mxu0 %v1023
    %1499 = vmatprep.subr.mxu0 0.0
    %1500 = vmatpush1.msra.mxu0 %v1022
    %1501 = vmatprep.subr.mxu0 0.0
    %1502 = vmatpush1.msra.mxu0 %v1021
    %1503 = vmatprep.subr.mxu0 0.0
    %1504 = vmatpush1.msra.mxu0 %v1020
    %1505 = vmatprep.subr.mxu0 0.0
    %1506 = vmatpush1.msra.mxu0 %v1019
    %1507 = vmatprep.subr.mxu0 0.0
    %1508 = vmatpush1.msra.mxu0 %v1018
    %1509 = vmatprep.subr.mxu0 0.0
    %1510 = vmatpush1.msra.mxu0 %v1017
    %1511 = vmatprep.subr.mxu0 0.0
    %1512 = vmatpush1.msra.mxu0 %v1016
    %1513 = vmatprep.subr.mxu0 0.0
    %1514 = vmatpush1.msra.mxu0 %v1015
    %1515 = vmatprep.subr.mxu0 0.0
    %1516 = vmatpush1.msra.mxu0 %v1014
    %1517 = vmatprep.subr.mxu0 0.0
    %1518 = vmatpush1.msra.mxu0 %v1013
    %1519 = vmatprep.subr.mxu0 0.0
    %1520 = vmatpush1.msra.mxu0 %v1012
    %1521 = vmatprep.subr.mxu0 0.0
    %1522 = vmatpush1.msra.mxu0 %v1011
    %1523 = vmatprep.subr.mxu0 0.0
    %1524 = vmatpush1.msra.mxu0 %v1010
    %1525 = vmatprep.subr.mxu0 0.0
    %1526 = vmatpush2.msra.mxu0 %v1041
    %1527 = vmatprep.subr.mxu0 0.0
    %1528 = vmatpush2.msra.mxu0 %v1040
    %1529 = vmatprep.subr.mxu0 0.0
    %1530 = vmatpush2.msra.mxu0 %v1039
    %1531 = vmatprep.subr.mxu0 0.0
    %1532 = vmatpush2.msra.mxu0 %v1038
    %1533 = vmatprep.subr.mxu0 0.0
    %1534 = vmatpush2.msra.mxu0 %v1037
    %1535 = vmatprep.subr.mxu0 0.0
    %1536 = vmatpush2.msra.mxu0 %v1036
    %1537 = vmatprep.subr.mxu0 0.0
    %1538 = vmatpush2.msra.mxu0 %v1035
    %1539 = vmatprep.subr.mxu0 0.0
    %1540 = vmatpush2.msra.mxu0 %v1034
    %1541 = vmatprep.subr.mxu0 0.0
    %1542 = vmatpush2.msra.mxu0 %v1033
    %1543 = vmatprep.subr.mxu0 0.0
    %1544 = vmatpush2.msra.mxu0 %v1032
    %1545 = vmatprep.subr.mxu0 0.0
    %1546 = vmatpush2.msra.mxu0 %v1031
    %1547 = vmatprep.subr.mxu0 0.0
    %1548 = vmatpush2.msra.mxu0 %v1030
    %1549 = vmatprep.subr.mxu0 0.0
    %1550 = vmatpush2.msra.mxu0 %v1029
    %1551 = vmatprep.subr.mxu0 0.0
    %1552 = vmatpush2.msra.mxu0 %v1028
    %1553 = vmatprep.subr.mxu0 0.0
    %1554 = vmatpush2.msra.mxu0 %v1027
    %1555 = vmatprep.subr.mxu0 0.0
    %1556 = vmatpush2.msra.mxu0 %v1026
    %1557 = vmatprep.mubr.f32.mxu0 %v761
    %1558 = vmatmul.mubr.f32.gmra.mxu0 %v760
    %v1559 = vpop.f32.mrf.mxu0
    %v1560 = vadd.f32 %v1415, %v1559
    %v1561 = vpop.f32.mrf.mxu0
    %1562 = vmatprep.mubr.f32.mxu0 %v770
    %1563 = vmatmul.mubr.f32.gmra.mxu0 %v769
    %v1564 = vpop.f32.mrf.mxu0
    %v1565 = vadd.f32 %v1420, %v1564
    %v1566 = vpop.f32.mrf.mxu0
    %1567 = vmatprep.mubr.f32.mxu0 %v779
    %1568 = vmatmul.mubr.f32.gmra.mxu0 %v778
    %v1569 = vpop.f32.mrf.mxu0
    %v1570 = vadd.f32 %v1425, %v1569
    %v1571 = vpop.f32.mrf.mxu0
    %1572 = vmatprep.mubr.f32.mxu0 %v788
    %1573 = vmatmul.mubr.f32.gmra.mxu0 %v787
    %v1574 = vpop.f32.mrf.mxu0
    %v1575 = vadd.f32 %v1430, %v1574
    %v1576 = vpop.f32.mrf.mxu0
    %1577 = vmatprep.mubr.f32.mxu0 %v797
    %1578 = vmatmul.mubr.f32.gmra.mxu0 %v796
    %v1579 = vpop.f32.mrf.mxu0
    %v1580 = vadd.f32 %v1435, %v1579
    %v1581 = vpop.f32.mrf.mxu0
    %1582 = vmatprep.mubr.f32.mxu0 %v806
    %1583 = vmatmul.mubr.f32.gmra.mxu0 %v805
    %v1584 = vpop.f32.mrf.mxu0
    %v1585 = vadd.f32 %v1440, %v1584
    %v1586 = vpop.f32.mrf.mxu0
    %1587 = vmatprep.mubr.f32.mxu0 %v815
    %1588 = vmatmul.mubr.f32.gmra.mxu0 %v814
    %v1589 = vpop.f32.mrf.mxu0
    %v1590 = vadd.f32 %v1445, %v1589
    %v1591 = vpop.f32.mrf.mxu0
    %1592 = vmatprep.mubr.f32.mxu0 %v824
    %1593 = vmatmul.mubr.f32.gmra.mxu0 %v823
    %v1594 = vpop.f32.mrf.mxu0
    %v1595 = vadd.f32 %v1450, %v1594
    %v1596 = vpop.f32.mrf.mxu0
    %1597 = vmatprep.mubr.f32.mxu0 %v833
    %1598 = vmatmul.mubr.f32.gmra.mxu0 %v832
    %v1599 = vpop.f32.mrf.mxu0
    %v1600 = vadd.f32 %v1455, %v1599
    %v1601 = vpop.f32.mrf.mxu0
    %1602 = vmatprep.mubr.f32.mxu0 %v842
    %1603 = vmatmul.mubr.f32.gmra.mxu0 %v841
    %v1604 = vpop.f32.mrf.mxu0
    %v1605 = vadd.f32 %v1460, %v1604
    %v1606 = vpop.f32.mrf.mxu0
    %1607 = vmatprep.mubr.f32.mxu0 %v851
    %1608 = vmatmul.mubr.f32.gmra.mxu0 %v850
    %v1609 = vpop.f32.mrf.mxu0
    %v1610 = vadd.f32 %v1465, %v1609
    %v1611 = vpop.f32.mrf.mxu0
    %1612 = vmatprep.mubr.f32.mxu0 %v860
    %1613 = vmatmul.mubr.f32.gmra.mxu0 %v859
    %v1614 = vpop.f32.mrf.mxu0
    %v1615 = vadd.f32 %v1470, %v1614
    %v1616 = vpop.f32.mrf.mxu0
    %1617 = vmatprep.mubr.f32.mxu0 %v869
    %1618 = vmatmul.mubr.f32.gmra.mxu0 %v868
    %v1619 = vpop.f32.mrf.mxu0
    %v1620 = vadd.f32 %v1475, %v1619
    %v1621 = vpop.f32.mrf.mxu0
    %1622 = vmatprep.mubr.f32.mxu0 %v878
    %1623 = vmatmul.mubr.f32.gmra.mxu0 %v877
    %v1624 = vpop.f32.mrf.mxu0
    %v1625 = vadd.f32 %v1480, %v1624
    %v1626 = vpop.f32.mrf.mxu0
    %1627 = vmatprep.mubr.f32.mxu0 %v887
    %1628 = vmatmul.mubr.f32.gmra.mxu0 %v886
    %v1629 = vpop.f32.mrf.mxu0
    %v1630 = vadd.f32 %v1485, %v1629
    %v1631 = vpop.f32.mrf.mxu0
    %1632 = vmatprep.mubr.f32.mxu0 %v896
    %1633 = vmatmul.mubr.f32.gmra.mxu0 %v895
    %v1634 = vpop.f32.mrf.mxu0
    %v1635 = vadd.f32 %v1490, %v1634
    %v1636 = vpop.f32.mrf.mxu0
    %1637 = vdwg.mxu0
    %1638 = vmatprep.subr.mxu0 0.0
    %1639 = vmatpush1.msra.mxu0 %v1057
    %1640 = vmatprep.subr.mxu0 0.0
    %1641 = vmatpush1.msra.mxu0 %v1056
    %1642 = vmatprep.subr.mxu0 0.0
    %1643 = vmatpush1.msra.mxu0 %v1055
    %1644 = vmatprep.subr.mxu0 0.0
    %1645 = vmatpush1.msra.mxu0 %v1054
    %1646 = vmatprep.subr.mxu0 0.0
    %1647 = vmatpush1.msra.mxu0 %v1053
    %1648 = vmatprep.subr.mxu0 0.0
    %1649 = vmatpush1.msra.mxu0 %v1052
    %1650 = vmatprep.subr.mxu0 0.0
    %1651 = vmatpush1.msra.mxu0 %v1051
    %1652 = vmatprep.subr.mxu0 0.0
    %1653 = vmatpush1.msra.mxu0 %v1050
    %1654 = vmatprep.subr.mxu0 0.0
    %1655 = vmatpush1.msra.mxu0 %v1049
    %1656 = vmatprep.subr.mxu0 0.0
    %1657 = vmatpush1.msra.mxu0 %v1048
    %1658 = vmatprep.subr.mxu0 0.0
    %1659 = vmatpush1.msra.mxu0 %v1047
    %1660 = vmatprep.subr.mxu0 0.0
    %1661 = vmatpush1.msra.mxu0 %v1046
    %1662 = vmatprep.subr.mxu0 0.0
    %1663 = vmatpush1.msra.mxu0 %v1045
    %1664 = vmatprep.subr.mxu0 0.0
    %1665 = vmatpush1.msra.mxu0 %v1044
    %1666 = vmatprep.subr.mxu0 0.0
    %1667 = vmatpush1.msra.mxu0 %v1043
    %1668 = vmatprep.subr.mxu0 0.0
    %1669 = vmatpush1.msra.mxu0 %v1042
    %1670 = vmatprep.subr.mxu0 0.0
    %1671 = vmatpush2.msra.mxu0 0.0
    %1672 = vmatprep.subr.mxu0 0.0
    %1673 = vmatpush2.msra.mxu0 0.0
    %1674 = vmatprep.subr.mxu0 0.0
    %1675 = vmatpush2.msra.mxu0 0.0
    %1676 = vmatprep.subr.mxu0 0.0
    %1677 = vmatpush2.msra.mxu0 0.0
    %1678 = vmatprep.subr.mxu0 0.0
    %1679 = vmatpush2.msra.mxu0 0.0
    %1680 = vmatprep.subr.mxu0 0.0
    %1681 = vmatpush2.msra.mxu0 0.0
    %1682 = vmatprep.subr.mxu0 0.0
    %1683 = vmatpush2.msra.mxu0 0.0
    %1684 = vmatprep.subr.mxu0 0.0
    %1685 = vmatpush2.msra.mxu0 0.0
    %1686 = vmatprep.subr.mxu0 0.0
    %1687 = vmatpush2.msra.mxu0 0.0
    %1688 = vmatprep.subr.mxu0 0.0
    %1689 = vmatpush2.msra.mxu0 0.0
    %1690 = vmatprep.subr.mxu0 0.0
    %1691 = vmatpush2.msra.mxu0 0.0
    %1692 = vmatprep.subr.mxu0 0.0
    %1693 = vmatpush2.msra.mxu0 0.0
    %1694 = vmatprep.subr.mxu0 0.0
    %1695 = vmatpush2.msra.mxu0 0.0
    %1696 = vmatprep.subr.mxu0 0.0
    %1697 = vmatpush2.msra.mxu0 0.0
    %1698 = vmatprep.subr.mxu0 0.0
    %1699 = vmatpush2.msra.mxu0 0.0
    %1700 = vmatprep.subr.mxu0 0.0
    %1701 = vmatpush2.msra.mxu0 0.0
    %1702 = vmatprep.mubr.f32.mxu0 0.0
    %1703 = vmatmul.mubr.f32.gmra.mxu0 %v762
    %v1704 = vpop.f32.mrf.mxu0
    %v1705 = vadd.f32 %v1560, %v1704
    %v1706 = vpop.f32.mrf.mxu0
    %1707 = vmatprep.mubr.f32.mxu0 0.0
    %1708 = vmatmul.mubr.f32.gmra.mxu0 %v771
    %v1709 = vpop.f32.mrf.mxu0
    %v1710 = vadd.f32 %v1565, %v1709
    %v1711 = vpop.f32.mrf.mxu0
    %1712 = vmatprep.mubr.f32.mxu0 0.0
    %1713 = vmatmul.mubr.f32.gmra.mxu0 %v780
    %v1714 = vpop.f32.mrf.mxu0
    %v1715 = vadd.f32 %v1570, %v1714
    %v1716 = vpop.f32.mrf.mxu0
    %1717 = vmatprep.mubr.f32.mxu0 0.0
    %1718 = vmatmul.mubr.f32.gmra.mxu0 %v789
    %v1719 = vpop.f32.mrf.mxu0
    %v1720 = vadd.f32 %v1575, %v1719
    %v1721 = vpop.f32.mrf.mxu0
    %1722 = vmatprep.mubr.f32.mxu0 0.0
    %1723 = vmatmul.mubr.f32.gmra.mxu0 %v798
    %v1724 = vpop.f32.mrf.mxu0
    %v1725 = vadd.f32 %v1580, %v1724
    %v1726 = vpop.f32.mrf.mxu0
    %1727 = vmatprep.mubr.f32.mxu0 0.0
    %1728 = vmatmul.mubr.f32.gmra.mxu0 %v807
    %v1729 = vpop.f32.mrf.mxu0
    %v1730 = vadd.f32 %v1585, %v1729
    %v1731 = vpop.f32.mrf.mxu0
    %1732 = vmatprep.mubr.f32.mxu0 0.0
    %1733 = vmatmul.mubr.f32.gmra.mxu0 %v816
    %v1734 = vpop.f32.mrf.mxu0
    %v1735 = vadd.f32 %v1590, %v1734
    %v1736 = vpop.f32.mrf.mxu0
    %1737 = vmatprep.mubr.f32.mxu0 0.0
    %1738 = vmatmul.mubr.f32.gmra.mxu0 %v825
    %v1739 = vpop.f32.mrf.mxu0
    %v1740 = vadd.f32 %v1595, %v1739
    %v1741 = vpop.f32.mrf.mxu0
    %1742 = vmatprep.mubr.f32.mxu0 0.0
    %1743 = vmatmul.mubr.f32.gmra.mxu0 %v834
    %v1744 = vpop.f32.mrf.mxu0
    %v1745 = vadd.f32 %v1600, %v1744
    %v1746 = vpop.f32.mrf.mxu0
    %1747 = vmatprep.mubr.f32.mxu0 0.0
    %1748 = vmatmul.mubr.f32.gmra.mxu0 %v843
    %v1749 = vpop.f32.mrf.mxu0
    %v1750 = vadd.f32 %v1605, %v1749
    %v1751 = vpop.f32.mrf.mxu0
    %1752 = vmatprep.mubr.f32.mxu0 0.0
    %1753 = vmatmul.mubr.f32.gmra.mxu0 %v852
    %v1754 = vpop.f32.mrf.mxu0
    %v1755 = vadd.f32 %v1610, %v1754
    %v1756 = vpop.f32.mrf.mxu0
    %1757 = vmatprep.mubr.f32.mxu0 0.0
    %1758 = vmatmul.mubr.f32.gmra.mxu0 %v861
    %v1759 = vpop.f32.mrf.mxu0
    %v1760 = vadd.f32 %v1615, %v1759
    %v1761 = vpop.f32.mrf.mxu0
    %1762 = vmatprep.mubr.f32.mxu0 0.0
    %1763 = vmatmul.mubr.f32.gmra.mxu0 %v870
    %v1764 = vpop.f32.mrf.mxu0
    %v1765 = vadd.f32 %v1620, %v1764
    %v1766 = vpop.f32.mrf.mxu0
    %1767 = vmatprep.mubr.f32.mxu0 0.0
    %1768 = vmatmul.mubr.f32.gmra.mxu0 %v879
    %v1769 = vpop.f32.mrf.mxu0
    %v1770 = vadd.f32 %v1625, %v1769
    %v1771 = vpop.f32.mrf.mxu0
    %1772 = vmatprep.mubr.f32.mxu0 0.0
    %1773 = vmatmul.mubr.f32.gmra.mxu0 %v888
    %v1774 = vpop.f32.mrf.mxu0
    %v1775 = vadd.f32 %v1630, %v1774
    %v1776 = vpop.f32.mrf.mxu0
    %1777 = vmatprep.mubr.f32.mxu0 0.0
    %1778 = vmatmul.mubr.f32.gmra.mxu0 %v897
    %v1779 = vpop.f32.mrf.mxu0
    %v1780 = vadd.f32 %v1635, %v1779
    %v1781 = vpop.f32.mrf.mxu0
    %1782 = vdwg.mxu0
    %v1783 = vmul.f32 %v898, %v1705
    %v1784 = vmul.f32 %v899, %v1710
    %v1785 = vmul.f32 %v900, %v1715
    %v1786 = vmul.f32 %v901, %v1720
    %v1787 = vmul.f32 %v902, %v1725
    %v1788 = vmul.f32 %v903, %v1730
    %v1789 = vmul.f32 %v904, %v1735
    %v1790 = vmul.f32 %v905, %v1740
    %v1791 = vmul.f32 %v906, %v1745
    %v1792 = vmul.f32 %v907, %v1750
    %v1793 = vmul.f32 %v908, %v1755
    %v1794 = vmul.f32 %v909, %v1760
    %v1795 = vmul.f32 %v910, %v1765
    %v1796 = vmul.f32 %v911, %v1770
    %v1797 = vmul.f32 %v912, %v1775
    %v1798 = vmul.f32 %v913, %v1780
    %1799 = vst [vmem:[#allocation14] sm:$0xff] %v1783
    %1800 = vst [vmem:[#allocation14 + $0x8] sm:$0xff] %v1784
    %1801 = vst [vmem:[#allocation14 + $0x10] sm:$0xff] %v1785
    %1802 = vst [vmem:[#allocation14 + $0x18] sm:$0xff] %v1786
    %1803 = vst [vmem:[#allocation14 + $0x20] sm:$0xff] %v1787
    %1804 = vst [vmem:[#allocation14 + $0x28] sm:$0xff] %v1788
    %1805 = vst [vmem:[#allocation14 + $0x30] sm:$0xff] %v1789
    %1806 = vst [vmem:[#allocation14 + $0x38] sm:$0xff] %v1790
    %1807 = vst [vmem:[#allocation14 + $0x40] sm:$0xff] %v1791
    %1808 = vst [vmem:[#allocation14 + $0x48] sm:$0xff] %v1792
    %1809 = vst [vmem:[#allocation14 + $0x50] sm:$0xff] %v1793
    %1810 = vst [vmem:[#allocation14 + $0x58] sm:$0xff] %v1794
    %1811 = vst [vmem:[#allocation14 + $0x60] sm:$0xff] %v1795
    %1812 = vst [vmem:[#allocation14 + $0x68] sm:$0xff] %v1796
    %1813 = vst [vmem:[#allocation14 + $0x70] sm:$0xff] %v1797
    %1814 = vst [vmem:[#allocation14 + $0x78] sm:$0xff] %v1798
    %v1815 = vld [vmem:[#allocation11] sm:$0xff]
    %v1816 = vld [vmem:[#allocation11 + $0x8] sm:$0xff]
    %v1817 = vld [vmem:[#allocation11 + $0x10] sm:$0xff]
    %v1818 = vld [vmem:[#allocation11 + $0x18] sm:$0xff]
    %v1819 = vld [vmem:[#allocation11 + $0x20] sm:$0xff]
    %v1820 = vld [vmem:[#allocation11 + $0x28] sm:$0xff]
    %v1821 = vld [vmem:[#allocation11 + $0x30] sm:$0xff]
    %v1822 = vld [vmem:[#allocation11 + $0x38] sm:$0xff]
    %v1823 = vld [vmem:[#allocation11 + $0x40] sm:$0xff]
    %v1824 = vld [vmem:[#allocation11 + $0x48] sm:$0xff]
    %v1825 = vld [vmem:[#allocation11 + $0x50] sm:$0xff]
    %v1826 = vld [vmem:[#allocation11 + $0x58] sm:$0xff]
    %v1827 = vld [vmem:[#allocation11 + $0x60] sm:$0xff]
    %v1828 = vld [vmem:[#allocation11 + $0x68] sm:$0xff]
    %v1829 = vld [vmem:[#allocation11 + $0x70] sm:$0xff]
    %v1830 = vld [vmem:[#allocation11 + $0x78] sm:$0xff]
    %v1831 = vld [vmem:[#allocation11 + $0x80] sm:$0xff]
    %v1832 = vld [vmem:[#allocation11 + $0x88] sm:$0xff]
    %v1833 = vld [vmem:[#allocation11 + $0x90] sm:$0xff]
    %v1834 = vld [vmem:[#allocation11 + $0x98] sm:$0xff]
    %v1835 = vld [vmem:[#allocation11 + $0xa0] sm:$0xff]
    %v1836 = vld [vmem:[#allocation11 + $0xa8] sm:$0xff]
    %v1837 = vld [vmem:[#allocation11 + $0xb0] sm:$0xff]
    %v1838 = vld [vmem:[#allocation11 + $0xb8] sm:$0xff]
    %v1839 = vld [vmem:[#allocation11 + $0xc0] sm:$0xff]
    %v1840 = vld [vmem:[#allocation11 + $0xc8] sm:$0xff]
    %v1841 = vld [vmem:[#allocation11 + $0xd0] sm:$0xff]
    %v1842 = vld [vmem:[#allocation11 + $0xd8] sm:$0xff]
    %v1843 = vld [vmem:[#allocation11 + $0xe0] sm:$0xff]
    %v1844 = vld [vmem:[#allocation11 + $0xe8] sm:$0xff]
    %v1845 = vld [vmem:[#allocation11 + $0xf0] sm:$0xff]
    %v1846 = vld [vmem:[#allocation11 + $0xf8] sm:$0xff]
    %v1847 = vld [vmem:[#allocation11 + $0x100] sm:$0xff]
    %v1848 = vld [vmem:[#allocation11 + $0x108] sm:$0xff]
    %v1849 = vld [vmem:[#allocation11 + $0x110] sm:$0xff]
    %v1850 = vld [vmem:[#allocation11 + $0x118] sm:$0xff]
    %v1851 = vld [vmem:[#allocation11 + $0x120] sm:$0xff]
    %v1852 = vld [vmem:[#allocation11 + $0x128] sm:$0xff]
    %v1853 = vld [vmem:[#allocation11 + $0x130] sm:$0xff]
    %v1854 = vld [vmem:[#allocation11 + $0x138] sm:$0xff]
    %v1855 = vld [vmem:[#allocation11 + $0x140] sm:$0xff]
    %v1856 = vld [vmem:[#allocation11 + $0x148] sm:$0xff]
    %v1857 = vld [vmem:[#allocation11 + $0x150] sm:$0xff]
    %v1858 = vld [vmem:[#allocation11 + $0x158] sm:$0xff]
    %v1859 = vld [vmem:[#allocation11 + $0x160] sm:$0xff]
    %v1860 = vld [vmem:[#allocation11 + $0x168] sm:$0xff]
    %v1861 = vld [vmem:[#allocation11 + $0x170] sm:$0xff]
    %v1862 = vld [vmem:[#allocation11 + $0x178] sm:$0xff]
    %v1863 = vld [vmem:[#allocation11 + $0x180] sm:$0xff]
    %v1864 = vld [vmem:[#allocation11 + $0x188] sm:$0xff]
    %v1865 = vld [vmem:[#allocation11 + $0x190] sm:$0xff]
    %v1866 = vld [vmem:[#allocation11 + $0x198] sm:$0xff]
    %v1867 = vld [vmem:[#allocation11 + $0x1a0] sm:$0xff]
    %v1868 = vld [vmem:[#allocation11 + $0x1a8] sm:$0xff]
    %v1869 = vld [vmem:[#allocation11 + $0x1b0] sm:$0xff]
    %v1870 = vld [vmem:[#allocation11 + $0x1b8] sm:$0xff]
    %v1871 = vld [vmem:[#allocation11 + $0x1c0] sm:$0xff]
    %v1872 = vld [vmem:[#allocation11 + $0x1c8] sm:$0xff]
    %v1873 = vld [vmem:[#allocation11 + $0x1d0] sm:$0xff]
    %v1874 = vld [vmem:[#allocation11 + $0x1d8] sm:$0xff]
    %v1875 = vld [vmem:[#allocation11 + $0x1e0] sm:$0xff]
    %v1876 = vld [vmem:[#allocation11 + $0x1e8] sm:$0xff]
    %v1877 = vld [vmem:[#allocation11 + $0x1f0] sm:$0xff]
    %v1878 = vld [vmem:[#allocation11 + $0x1f8] sm:$0xff]
    %v1879 = vld [vmem:[#allocation11 + $0x200] sm:$0xff]
    %v1880 = vld [vmem:[#allocation11 + $0x208] sm:$0xff]
    %v1881 = vld [vmem:[#allocation11 + $0x210] sm:$0xff]
    %v1882 = vld [vmem:[#allocation11 + $0x218] sm:$0xff]
    %v1883 = vld [vmem:[#allocation11 + $0x220] sm:$0xff]
    %v1884 = vld [vmem:[#allocation11 + $0x228] sm:$0xff]
    %v1885 = vld [vmem:[#allocation11 + $0x230] sm:$0xff]
    %v1886 = vld [vmem:[#allocation11 + $0x238] sm:$0xff]
    %v1887 = vld [vmem:[#allocation11 + $0x240] sm:$0xff]
    %v1888 = vld [vmem:[#allocation11 + $0x248] sm:$0xff]
    %v1889 = vld [vmem:[#allocation11 + $0x250] sm:$0xff]
    %v1890 = vld [vmem:[#allocation11 + $0x258] sm:$0xff]
    %v1891 = vld [vmem:[#allocation11 + $0x260] sm:$0xff]
    %v1892 = vld [vmem:[#allocation11 + $0x268] sm:$0xff]
    %v1893 = vld [vmem:[#allocation11 + $0x270] sm:$0xff]
    %v1894 = vld [vmem:[#allocation11 + $0x278] sm:$0xff]
    %v1895 = vld [vmem:[#allocation11 + $0x280] sm:$0xff]
    %v1896 = vld [vmem:[#allocation11 + $0x288] sm:$0xff]
    %v1897 = vld [vmem:[#allocation11 + $0x290] sm:$0xff]
    %v1898 = vld [vmem:[#allocation11 + $0x298] sm:$0xff]
    %v1899 = vld [vmem:[#allocation11 + $0x2a0] sm:$0xff]
    %v1900 = vld [vmem:[#allocation11 + $0x2a8] sm:$0xff]
    %v1901 = vld [vmem:[#allocation11 + $0x2b0] sm:$0xff]
    %v1902 = vld [vmem:[#allocation11 + $0x2b8] sm:$0xff]
    %v1903 = vld [vmem:[#allocation11 + $0x2c0] sm:$0xff]
    %v1904 = vld [vmem:[#allocation11 + $0x2c8] sm:$0xff]
    %v1905 = vld [vmem:[#allocation11 + $0x2d0] sm:$0xff]
    %v1906 = vld [vmem:[#allocation11 + $0x2d8] sm:$0xff]
    %v1907 = vld [vmem:[#allocation11 + $0x2e0] sm:$0xff]
    %v1908 = vld [vmem:[#allocation11 + $0x2e8] sm:$0xff]
    %v1909 = vld [vmem:[#allocation11 + $0x2f0] sm:$0xff]
    %v1910 = vld [vmem:[#allocation11 + $0x2f8] sm:$0xff]
    %v1911 = vld [vmem:[#allocation11 + $0x300] sm:$0xff]
    %v1912 = vld [vmem:[#allocation11 + $0x308] sm:$0xff]
    %v1913 = vld [vmem:[#allocation11 + $0x310] sm:$0xff]
    %v1914 = vld [vmem:[#allocation11 + $0x318] sm:$0xff]
    %v1915 = vld [vmem:[#allocation11 + $0x320] sm:$0xff]
    %v1916 = vld [vmem:[#allocation11 + $0x328] sm:$0xff]
    %v1917 = vld [vmem:[#allocation11 + $0x330] sm:$0xff]
    %v1918 = vld [vmem:[#allocation11 + $0x338] sm:$0xff]
    %v1919 = vld [vmem:[#allocation11 + $0x340] sm:$0xff]
    %v1920 = vld [vmem:[#allocation11 + $0x348] sm:$0xff]
    %v1921 = vld [vmem:[#allocation11 + $0x350] sm:$0xff]
    %v1922 = vld [vmem:[#allocation11 + $0x358] sm:$0xff]
    %v1923 = vld [vmem:[#allocation11 + $0x360] sm:$0xff]
    %v1924 = vld [vmem:[#allocation11 + $0x368] sm:$0xff]
    %v1925 = vld [vmem:[#allocation11 + $0x370] sm:$0xff]
    %v1926 = vld [vmem:[#allocation11 + $0x378] sm:$0xff]
    %v1927 = vld [vmem:[#allocation11 + $0x380] sm:$0xff]
    %v1928 = vld [vmem:[#allocation11 + $0x388] sm:$0xff]
    %v1929 = vld [vmem:[#allocation11 + $0x390] sm:$0xff]
    %v1930 = vld [vmem:[#allocation11 + $0x398] sm:$0xff]
    %v1931 = vld [vmem:[#allocation11 + $0x3a0] sm:$0xff]
    %v1932 = vld [vmem:[#allocation11 + $0x3a8] sm:$0xff]
    %v1933 = vld [vmem:[#allocation11 + $0x3b0] sm:$0xff]
    %v1934 = vld [vmem:[#allocation11 + $0x3b8] sm:$0xff]
    %v1935 = vld [vmem:[#allocation11 + $0x3c0] sm:$0xff]
    %v1936 = vld [vmem:[#allocation11 + $0x3c8] sm:$0xff]
    %v1937 = vld [vmem:[#allocation11 + $0x3d0] sm:$0xff]
    %v1938 = vld [vmem:[#allocation11 + $0x3d8] sm:$0xff]
    %v1939 = vld [vmem:[#allocation11 + $0x3e0] sm:$0xff]
    %v1940 = vld [vmem:[#allocation11 + $0x3e8] sm:$0xff]
    %v1941 = vld [vmem:[#allocation11 + $0x3f0] sm:$0xff]
    %v1942 = vld [vmem:[#allocation11 + $0x3f8] sm:$0xff]
    %v1943 = vld [vmem:[#allocation11 + $0x400] sm:$0xff]
    %v1944 = vld [vmem:[#allocation11 + $0x408] sm:$0xff]
    %v1945 = vld [vmem:[#allocation11 + $0x410] sm:$0xff]
    %v1946 = vld [vmem:[#allocation11 + $0x418] sm:$0xff]
    %v1947 = vld [vmem:[#allocation11 + $0x420] sm:$0xff]
    %v1948 = vld [vmem:[#allocation11 + $0x428] sm:$0xff]
    %v1949 = vld [vmem:[#allocation11 + $0x430] sm:$0xff]
    %v1950 = vld [vmem:[#allocation11 + $0x438] sm:$0xff]
    %v1951 = vld [vmem:[#allocation11 + $0x440] sm:$0xff]
    %v1952 = vld [vmem:[#allocation11 + $0x448] sm:$0xff]
    %v1953 = vld [vmem:[#allocation11 + $0x450] sm:$0xff]
    %v1954 = vld [vmem:[#allocation11 + $0x458] sm:$0xff]
    %v1955 = vld [vmem:[#allocation11 + $0x460] sm:$0xff]
    %v1956 = vld [vmem:[#allocation11 + $0x468] sm:$0xff]
    %v1957 = vld [vmem:[#allocation11 + $0x470] sm:$0xff]
    %v1958 = vld [vmem:[#allocation11 + $0x478] sm:$0xff]
    %1959 = vmatprep.subr.mxu0 0.0
    %1960 = vmatpush1.msra.mxu0 %v1830
    %1961 = vmatprep.subr.mxu0 0.0
    %1962 = vmatpush1.msra.mxu0 %v1829
    %1963 = vmatprep.subr.mxu0 0.0
    %1964 = vmatpush1.msra.mxu0 %v1828
    %1965 = vmatprep.subr.mxu0 0.0
    %1966 = vmatpush1.msra.mxu0 %v1827
    %1967 = vmatprep.subr.mxu0 0.0
    %1968 = vmatpush1.msra.mxu0 %v1826
    %1969 = vmatprep.subr.mxu0 0.0
    %1970 = vmatpush1.msra.mxu0 %v1825
    %1971 = vmatprep.subr.mxu0 0.0
    %1972 = vmatpush1.msra.mxu0 %v1824
    %1973 = vmatprep.subr.mxu0 0.0
    %1974 = vmatpush1.msra.mxu0 %v1823
    %1975 = vmatprep.subr.mxu0 0.0
    %1976 = vmatpush1.msra.mxu0 %v1822
    %1977 = vmatprep.subr.mxu0 0.0
    %1978 = vmatpush1.msra.mxu0 %v1821
    %1979 = vmatprep.subr.mxu0 0.0
    %1980 = vmatpush1.msra.mxu0 %v1820
    %1981 = vmatprep.subr.mxu0 0.0
    %1982 = vmatpush1.msra.mxu0 %v1819
    %1983 = vmatprep.subr.mxu0 0.0
    %1984 = vmatpush1.msra.mxu0 %v1818
    %1985 = vmatprep.subr.mxu0 0.0
    %1986 = vmatpush1.msra.mxu0 %v1817
    %1987 = vmatprep.subr.mxu0 0.0
    %1988 = vmatpush1.msra.mxu0 %v1816
    %1989 = vmatprep.subr.mxu0 0.0
    %1990 = vmatpush1.msra.mxu0 %v1815
    %1991 = vmatprep.subr.mxu0 0.0
    %1992 = vmatpush2.msra.mxu0 %v1846
    %1993 = vmatprep.subr.mxu0 0.0
    %1994 = vmatpush2.msra.mxu0 %v1845
    %1995 = vmatprep.subr.mxu0 0.0
    %1996 = vmatpush2.msra.mxu0 %v1844
    %1997 = vmatprep.subr.mxu0 0.0
    %1998 = vmatpush2.msra.mxu0 %v1843
    %1999 = vmatprep.subr.mxu0 0.0
    %2000 = vmatpush2.msra.mxu0 %v1842
    %2001 = vmatprep.subr.mxu0 0.0
    %2002 = vmatpush2.msra.mxu0 %v1841
    %2003 = vmatprep.subr.mxu0 0.0
    %2004 = vmatpush2.msra.mxu0 %v1840
    %2005 = vmatprep.subr.mxu0 0.0
    %2006 = vmatpush2.msra.mxu0 %v1839
    %2007 = vmatprep.subr.mxu0 0.0
    %2008 = vmatpush2.msra.mxu0 %v1838
    %2009 = vmatprep.subr.mxu0 0.0
    %2010 = vmatpush2.msra.mxu0 %v1837
    %2011 = vmatprep.subr.mxu0 0.0
    %2012 = vmatpush2.msra.mxu0 %v1836
    %2013 = vmatprep.subr.mxu0 0.0
    %2014 = vmatpush2.msra.mxu0 %v1835
    %2015 = vmatprep.subr.mxu0 0.0
    %2016 = vmatpush2.msra.mxu0 %v1834
    %2017 = vmatprep.subr.mxu0 0.0
    %2018 = vmatpush2.msra.mxu0 %v1833
    %2019 = vmatprep.subr.mxu0 0.0
    %2020 = vmatpush2.msra.mxu0 %v1832
    %2021 = vmatprep.subr.mxu0 0.0
    %2022 = vmatpush2.msra.mxu0 %v1831
    %2023 = vmatprep.mubr.f32.mxu0 %v289
    %2024 = vmatmul.mubr.f32.gmra.mxu0 %v287
    %v2025 = vpop.f32.mrf.mxu0
    %v2026 = vadd.f32 0.0, %v2025
    %v2027 = vpop.f32.mrf.mxu0
    %2028 = vdwg.mxu0
    %2029 = vmatprep.subr.mxu0 0.0
    %2030 = vmatpush1.msra.mxu0 %v1862
    %2031 = vmatprep.subr.mxu0 0.0
    %2032 = vmatpush1.msra.mxu0 %v1861
    %2033 = vmatprep.subr.mxu0 0.0
    %2034 = vmatpush1.msra.mxu0 %v1860
    %2035 = vmatprep.subr.mxu0 0.0
    %2036 = vmatpush1.msra.mxu0 %v1859
    %2037 = vmatprep.subr.mxu0 0.0
    %2038 = vmatpush1.msra.mxu0 %v1858
    %2039 = vmatprep.subr.mxu0 0.0
    %2040 = vmatpush1.msra.mxu0 %v1857
    %2041 = vmatprep.subr.mxu0 0.0
    %2042 = vmatpush1.msra.mxu0 %v1856
    %2043 = vmatprep.subr.mxu0 0.0
    %2044 = vmatpush1.msra.mxu0 %v1855
    %2045 = vmatprep.subr.mxu0 0.0
    %2046 = vmatpush1.msra.mxu0 %v1854
    %2047 = vmatprep.subr.mxu0 0.0
    %2048 = vmatpush1.msra.mxu0 %v1853
    %2049 = vmatprep.subr.mxu0 0.0
    %2050 = vmatpush1.msra.mxu0 %v1852
    %2051 = vmatprep.subr.mxu0 0.0
    %2052 = vmatpush1.msra.mxu0 %v1851
    %2053 = vmatprep.subr.mxu0 0.0
    %2054 = vmatpush1.msra.mxu0 %v1850
    %2055 = vmatprep.subr.mxu0 0.0
    %2056 = vmatpush1.msra.mxu0 %v1849
    %2057 = vmatprep.subr.mxu0 0.0
    %2058 = vmatpush1.msra.mxu0 %v1848
    %2059 = vmatprep.subr.mxu0 0.0
    %2060 = vmatpush1.msra.mxu0 %v1847
    %2061 = vmatprep.subr.mxu0 0.0
    %2062 = vmatpush2.msra.mxu0 %v1878
    %2063 = vmatprep.subr.mxu0 0.0
    %2064 = vmatpush2.msra.mxu0 %v1877
    %2065 = vmatprep.subr.mxu0 0.0
    %2066 = vmatpush2.msra.mxu0 %v1876
    %2067 = vmatprep.subr.mxu0 0.0
    %2068 = vmatpush2.msra.mxu0 %v1875
    %2069 = vmatprep.subr.mxu0 0.0
    %2070 = vmatpush2.msra.mxu0 %v1874
    %2071 = vmatprep.subr.mxu0 0.0
    %2072 = vmatpush2.msra.mxu0 %v1873
    %2073 = vmatprep.subr.mxu0 0.0
    %2074 = vmatpush2.msra.mxu0 %v1872
    %2075 = vmatprep.subr.mxu0 0.0
    %2076 = vmatpush2.msra.mxu0 %v1871
    %2077 = vmatprep.subr.mxu0 0.0
    %2078 = vmatpush2.msra.mxu0 %v1870
    %2079 = vmatprep.subr.mxu0 0.0
    %2080 = vmatpush2.msra.mxu0 %v1869
    %2081 = vmatprep.subr.mxu0 0.0
    %2082 = vmatpush2.msra.mxu0 %v1868
    %2083 = vmatprep.subr.mxu0 0.0
    %2084 = vmatpush2.msra.mxu0 %v1867
    %2085 = vmatprep.subr.mxu0 0.0
    %2086 = vmatpush2.msra.mxu0 %v1866
    %2087 = vmatprep.subr.mxu0 0.0
    %2088 = vmatpush2.msra.mxu0 %v1865
    %2089 = vmatprep.subr.mxu0 0.0
    %2090 = vmatpush2.msra.mxu0 %v1864
    %2091 = vmatprep.subr.mxu0 0.0
    %2092 = vmatpush2.msra.mxu0 %v1863
    %2093 = vmatprep.mubr.f32.mxu0 %v360
    %2094 = vmatmul.mubr.f32.gmra.mxu0 %v358
    %v2095 = vpop.f32.mrf.mxu0
    %v2096 = vadd.f32 %v2026, %v2095
    %v2097 = vpop.f32.mrf.mxu0
    %2098 = vdwg.mxu0
    %2099 = vmatprep.subr.mxu0 0.0
    %2100 = vmatpush1.msra.mxu0 %v1894
    %2101 = vmatprep.subr.mxu0 0.0
    %2102 = vmatpush1.msra.mxu0 %v1893
    %2103 = vmatprep.subr.mxu0 0.0
    %2104 = vmatpush1.msra.mxu0 %v1892
    %2105 = vmatprep.subr.mxu0 0.0
    %2106 = vmatpush1.msra.mxu0 %v1891
    %2107 = vmatprep.subr.mxu0 0.0
    %2108 = vmatpush1.msra.mxu0 %v1890
    %2109 = vmatprep.subr.mxu0 0.0
    %2110 = vmatpush1.msra.mxu0 %v1889
    %2111 = vmatprep.subr.mxu0 0.0
    %2112 = vmatpush1.msra.mxu0 %v1888
    %2113 = vmatprep.subr.mxu0 0.0
    %2114 = vmatpush1.msra.mxu0 %v1887
    %2115 = vmatprep.subr.mxu0 0.0
    %2116 = vmatpush1.msra.mxu0 %v1886
    %2117 = vmatprep.subr.mxu0 0.0
    %2118 = vmatpush1.msra.mxu0 %v1885
    %2119 = vmatprep.subr.mxu0 0.0
    %2120 = vmatpush1.msra.mxu0 %v1884
    %2121 = vmatprep.subr.mxu0 0.0
    %2122 = vmatpush1.msra.mxu0 %v1883
    %2123 = vmatprep.subr.mxu0 0.0
    %2124 = vmatpush1.msra.mxu0 %v1882
    %2125 = vmatprep.subr.mxu0 0.0
    %2126 = vmatpush1.msra.mxu0 %v1881
    %2127 = vmatprep.subr.mxu0 0.0
    %2128 = vmatpush1.msra.mxu0 %v1880
    %2129 = vmatprep.subr.mxu0 0.0
    %2130 = vmatpush1.msra.mxu0 %v1879
    %2131 = vmatprep.subr.mxu0 0.0
    %2132 = vmatpush2.msra.mxu0 %v1910
    %2133 = vmatprep.subr.mxu0 0.0
    %2134 = vmatpush2.msra.mxu0 %v1909
    %2135 = vmatprep.subr.mxu0 0.0
    %2136 = vmatpush2.msra.mxu0 %v1908
    %2137 = vmatprep.subr.mxu0 0.0
    %2138 = vmatpush2.msra.mxu0 %v1907
    %2139 = vmatprep.subr.mxu0 0.0
    %2140 = vmatpush2.msra.mxu0 %v1906
    %2141 = vmatprep.subr.mxu0 0.0
    %2142 = vmatpush2.msra.mxu0 %v1905
    %2143 = vmatprep.subr.mxu0 0.0
    %2144 = vmatpush2.msra.mxu0 %v1904
    %2145 = vmatprep.subr.mxu0 0.0
    %2146 = vmatpush2.msra.mxu0 %v1903
    %2147 = vmatprep.subr.mxu0 0.0
    %2148 = vmatpush2.msra.mxu0 %v1902
    %2149 = vmatprep.subr.mxu0 0.0
    %2150 = vmatpush2.msra.mxu0 %v1901
    %2151 = vmatprep.subr.mxu0 0.0
    %2152 = vmatpush2.msra.mxu0 %v1900
    %2153 = vmatprep.subr.mxu0 0.0
    %2154 = vmatpush2.msra.mxu0 %v1899
    %2155 = vmatprep.subr.mxu0 0.0
    %2156 = vmatpush2.msra.mxu0 %v1898
    %2157 = vmatprep.subr.mxu0 0.0
    %2158 = vmatpush2.msra.mxu0 %v1897
    %2159 = vmatprep.subr.mxu0 0.0
    %2160 = vmatpush2.msra.mxu0 %v1896
    %2161 = vmatprep.subr.mxu0 0.0
    %2162 = vmatpush2.msra.mxu0 %v1895
    %2163 = vmatprep.mubr.f32.mxu0 %v431
    %2164 = vmatmul.mubr.f32.gmra.mxu0 %v429
    %v2165 = vpop.f32.mrf.mxu0
    %v2166 = vadd.f32 %v2096, %v2165
    %v2167 = vpop.f32.mrf.mxu0
    %2168 = vdwg.mxu0
    %2169 = vmatprep.subr.mxu0 0.0
    %2170 = vmatpush1.msra.mxu0 %v1926
    %2171 = vmatprep.subr.mxu0 0.0
    %2172 = vmatpush1.msra.mxu0 %v1925
    %2173 = vmatprep.subr.mxu0 0.0
    %2174 = vmatpush1.msra.mxu0 %v1924
    %2175 = vmatprep.subr.mxu0 0.0
    %2176 = vmatpush1.msra.mxu0 %v1923
    %2177 = vmatprep.subr.mxu0 0.0
    %2178 = vmatpush1.msra.mxu0 %v1922
    %2179 = vmatprep.subr.mxu0 0.0
    %2180 = vmatpush1.msra.mxu0 %v1921
    %2181 = vmatprep.subr.mxu0 0.0
    %2182 = vmatpush1.msra.mxu0 %v1920
    %2183 = vmatprep.subr.mxu0 0.0
    %2184 = vmatpush1.msra.mxu0 %v1919
    %2185 = vmatprep.subr.mxu0 0.0
    %2186 = vmatpush1.msra.mxu0 %v1918
    %2187 = vmatprep.subr.mxu0 0.0
    %2188 = vmatpush1.msra.mxu0 %v1917
    %2189 = vmatprep.subr.mxu0 0.0
    %2190 = vmatpush1.msra.mxu0 %v1916
    %2191 = vmatprep.subr.mxu0 0.0
    %2192 = vmatpush1.msra.mxu0 %v1915
    %2193 = vmatprep.subr.mxu0 0.0
    %2194 = vmatpush1.msra.mxu0 %v1914
    %2195 = vmatprep.subr.mxu0 0.0
    %2196 = vmatpush1.msra.mxu0 %v1913
    %2197 = vmatprep.subr.mxu0 0.0
    %2198 = vmatpush1.msra.mxu0 %v1912
    %2199 = vmatprep.subr.mxu0 0.0
    %2200 = vmatpush1.msra.mxu0 %v1911
    %2201 = vmatprep.subr.mxu0 0.0
    %2202 = vmatpush2.msra.mxu0 %v1942
    %2203 = vmatprep.subr.mxu0 0.0
    %2204 = vmatpush2.msra.mxu0 %v1941
    %2205 = vmatprep.subr.mxu0 0.0
    %2206 = vmatpush2.msra.mxu0 %v1940
    %2207 = vmatprep.subr.mxu0 0.0
    %2208 = vmatpush2.msra.mxu0 %v1939
    %2209 = vmatprep.subr.mxu0 0.0
    %2210 = vmatpush2.msra.mxu0 %v1938
    %2211 = vmatprep.subr.mxu0 0.0
    %2212 = vmatpush2.msra.mxu0 %v1937
    %2213 = vmatprep.subr.mxu0 0.0
    %2214 = vmatpush2.msra.mxu0 %v1936
    %2215 = vmatprep.subr.mxu0 0.0
    %2216 = vmatpush2.msra.mxu0 %v1935
    %2217 = vmatprep.subr.mxu0 0.0
    %2218 = vmatpush2.msra.mxu0 %v1934
    %2219 = vmatprep.subr.mxu0 0.0
    %2220 = vmatpush2.msra.mxu0 %v1933
    %2221 = vmatprep.subr.mxu0 0.0
    %2222 = vmatpush2.msra.mxu0 %v1932
    %2223 = vmatprep.subr.mxu0 0.0
    %2224 = vmatpush2.msra.mxu0 %v1931
    %2225 = vmatprep.subr.mxu0 0.0
    %2226 = vmatpush2.msra.mxu0 %v1930
    %2227 = vmatprep.subr.mxu0 0.0
    %2228 = vmatpush2.msra.mxu0 %v1929
    %2229 = vmatprep.subr.mxu0 0.0
    %2230 = vmatpush2.msra.mxu0 %v1928
    %2231 = vmatprep.subr.mxu0 0.0
    %2232 = vmatpush2.msra.mxu0 %v1927
    %2233 = vmatprep.mubr.f32.mxu0 %v502
    %2234 = vmatmul.mubr.f32.gmra.mxu0 %v500
    %v2235 = vpop.f32.mrf.mxu0
    %v2236 = vadd.f32 %v2166, %v2235
    %v2237 = vpop.f32.mrf.mxu0
    %2238 = vdwg.mxu0
    %2239 = vmatprep.subr.mxu0 0.0
    %2240 = vmatpush1.msra.mxu0 %v1958
    %2241 = vmatprep.subr.mxu0 0.0
    %2242 = vmatpush1.msra.mxu0 %v1957
    %2243 = vmatprep.subr.mxu0 0.0
    %2244 = vmatpush1.msra.mxu0 %v1956
    %2245 = vmatprep.subr.mxu0 0.0
    %2246 = vmatpush1.msra.mxu0 %v1955
    %2247 = vmatprep.subr.mxu0 0.0
    %2248 = vmatpush1.msra.mxu0 %v1954
    %2249 = vmatprep.subr.mxu0 0.0
    %2250 = vmatpush1.msra.mxu0 %v1953
    %2251 = vmatprep.subr.mxu0 0.0
    %2252 = vmatpush1.msra.mxu0 %v1952
    %2253 = vmatprep.subr.mxu0 0.0
    %2254 = vmatpush1.msra.mxu0 %v1951
    %2255 = vmatprep.subr.mxu0 0.0
    %2256 = vmatpush1.msra.mxu0 %v1950
    %2257 = vmatprep.subr.mxu0 0.0
    %2258 = vmatpush1.msra.mxu0 %v1949
    %2259 = vmatprep.subr.mxu0 0.0
    %2260 = vmatpush1.msra.mxu0 %v1948
    %2261 = vmatprep.subr.mxu0 0.0
    %2262 = vmatpush1.msra.mxu0 %v1947
    %2263 = vmatprep.subr.mxu0 0.0
    %2264 = vmatpush1.msra.mxu0 %v1946
    %2265 = vmatprep.subr.mxu0 0.0
    %2266 = vmatpush1.msra.mxu0 %v1945
    %2267 = vmatprep.subr.mxu0 0.0
    %2268 = vmatpush1.msra.mxu0 %v1944
    %2269 = vmatprep.subr.mxu0 0.0
    %2270 = vmatpush1.msra.mxu0 %v1943
    %2271 = vmatprep.subr.mxu0 0.0
    %2272 = vmatpush2.msra.mxu0 0.0
    %2273 = vmatprep.subr.mxu0 0.0
    %2274 = vmatpush2.msra.mxu0 0.0
    %2275 = vmatprep.subr.mxu0 0.0
    %2276 = vmatpush2.msra.mxu0 0.0
    %2277 = vmatprep.subr.mxu0 0.0
    %2278 = vmatpush2.msra.mxu0 0.0
    %2279 = vmatprep.subr.mxu0 0.0
    %2280 = vmatpush2.msra.mxu0 0.0
    %2281 = vmatprep.subr.mxu0 0.0
    %2282 = vmatpush2.msra.mxu0 0.0
    %2283 = vmatprep.subr.mxu0 0.0
    %2284 = vmatpush2.msra.mxu0 0.0
    %2285 = vmatprep.subr.mxu0 0.0
    %2286 = vmatpush2.msra.mxu0 0.0
    %2287 = vmatprep.subr.mxu0 0.0
    %2288 = vmatpush2.msra.mxu0 0.0
    %2289 = vmatprep.subr.mxu0 0.0
    %2290 = vmatpush2.msra.mxu0 0.0
    %2291 = vmatprep.subr.mxu0 0.0
    %2292 = vmatpush2.msra.mxu0 0.0
    %2293 = vmatprep.subr.mxu0 0.0
    %2294 = vmatpush2.msra.mxu0 0.0
    %2295 = vmatprep.subr.mxu0 0.0
    %2296 = vmatpush2.msra.mxu0 0.0
    %2297 = vmatprep.subr.mxu0 0.0
    %2298 = vmatpush2.msra.mxu0 0.0
    %2299 = vmatprep.subr.mxu0 0.0
    %2300 = vmatpush2.msra.mxu0 0.0
    %2301 = vmatprep.subr.mxu0 0.0
    %2302 = vmatpush2.msra.mxu0 0.0
    %2303 = vmatprep.mubr.f32.mxu0 0.0
    %2304 = vmatmul.mubr.f32.gmra.mxu0 %v571
    %v2305 = vpop.f32.mrf.mxu0
    %v2306 = vadd.f32 %v2236, %v2305
    %v2307 = vpop.f32.mrf.mxu0
    %2308 = vdwg.mxu0
    %2309 = vst [vmem:[#allocation15] sm:$0x1] %v2306
    // Predicated region
    $region58: #{tpu_custom_call.1} parent=1 // pred_check
      _
    $region59: #{tpu_custom_call.1} parent=1 // pred_check_branch
      %2311 = sbr.rel (0) target = $region61
    $region60: #{tpu_custom_call.1} parent=1 // pred_region
      %s2313 = ssub.s32 2048, 2048
      %2314 = vsyncadd [#allocation4], %s2313
      %s2315 = sshll.u32 [#allocation14], 4
      %s2316 = int_to_ptr.vmem [resolvable:$true] %s2315
      %2321 = dma.vmem_to_hbm [thread:$0]  %s2316, 2048, %s7, [#allocation4], 128, 128, 8
    $region61: #{tpu_custom_call.1} parent=1 // pred_fallthru
      _
    // Predicated region
    $region62: #{tpu_custom_call.1} parent=1 // pred_check
      _
    $region63: #{tpu_custom_call.1} parent=1 // pred_check_branch
      %2323 = sbr.rel (0) target = $region65
    $region64: #{tpu_custom_call.1} parent=1 // pred_region
      %s2325 = ssub.s32 16, 16
      %2326 = vsyncadd [#allocation16], %s2325
      %s2328 = sshll.u32 [#allocation15], 4
      %s2329 = int_to_ptr.vmem [resolvable:$true] %s2328
      %2331 = dma.vmem_to_hbm [thread:$0]  %s2329, 16, %s8, [#allocation16]
    $region65: #{tpu_custom_call.1} parent=1 // pred_fallthru
      _
    // Predicated region
    $region66: #{tpu_custom_call.1} parent=1 // pred_check
      _
    $region67: #{tpu_custom_call.1} parent=1 // pred_check_branch
      %2333 = sbr.rel (0) target = $region69
    $region68: #{tpu_custom_call.1} parent=1 // pred_region
      %2334 = dma.done [#allocation4], 2048
    $region69: #{tpu_custom_call.1} parent=1 // pred_fallthru
      _
    // Predicated region
    $region70: #{tpu_custom_call.1} parent=1 // pred_check
      _
    $region71: #{tpu_custom_call.1} parent=1 // pred_check_branch
      %2336 = sbr.rel (0) target = $region73
    $region72: #{tpu_custom_call.1} parent=1 // pred_region
      %2337 = dma.done [#allocation16], 16
    $region73: #{tpu_custom_call.1} parent=1 // pred_fallthru
      _
    %2338 = vsyncpa [#allocation3], 1
    %2339 = vsyncpa [#allocation6], 1
    %2340 = vsyncpa [#allocation9], 1
    %2341 = vsyncpa [#allocation12], 1
    %2342 = vsyncpa [#allocation4], 1
    %2343 = vsyncpa [#allocation16], 1

</llo_original>
